<compile_context>
chip_gen: v6e
topology: v6e:2x2x1
jax: 0.10.0
libtpu: 0.0.40
codegen_flags: <defaults>
</compile_context>

<pallas_src>
import functools
import math

import jax
import jax.numpy as jnp
import numpy as np
from jax.experimental import pallas as pl
from jax.experimental.pallas import tpu as pltpu

NUM_HEADS = 4
LN_EPS = 1e-5


def _round_up(x, m):
    return ((x + m - 1) // m) * m


# ---------------------------------------------------------------------------
# kernel
# ---------------------------------------------------------------------------
def adapter_kernel(x_ref, slab_ref, o_ref, *, num_heads, hidden_padded):
    Bt, S, D = x_ref.shape
    H = num_heads
    Dh = D // H
    R = Bt * S
    hp = hidden_padded
    scale = 1.0 / math.sqrt(Dh)

    # ---- static views into the packed parameter slab -----------------------
    c1 = _round_up(D, 128)          # col start of w1_t inside its row band
    r1 = D                          # rows [r1, r1+D) : w_out_t | w1_t
    r2 = 2 * D                      # rows [r2, r2+hp): w2_t
    r3 = 2 * D + hp                 # rows [r3, r3+8) : bias / LN vectors

    w_in_t = slab_ref[0:D, 0:3 * D]                # (D, 3D)
    w_out_t = slab_ref[r1:r1 + D, 0:D]             # (D, D)
    w1_t = slab_ref[r1:r1 + D, c1:c1 + hp]         # (D, hp)
    w2_t = slab_ref[r2:r2 + hp, 0:D]               # (hp, D)
    b_in = slab_ref[r3 + 0:r3 + 1, 0:3 * D]        # (1, 3D)
    b_out = slab_ref[r3 + 1:r3 + 2, 0:D]
    g1 = slab_ref[r3 + 2:r3 + 3, 0:D]
    beta1 = slab_ref[r3 + 3:r3 + 4, 0:D]
    bb1 = slab_ref[r3 + 4:r3 + 5, 0:hp]
    bb2 = slab_ref[r3 + 5:r3 + 6, 0:D]
    g2 = slab_ref[r3 + 6:r3 + 7, 0:D]
    beta2 = slab_ref[r3 + 7:r3 + 8, 0:D]

    # ---- flatten all rows of this tile so the big matmuls see (R, D) -------
    x = x_ref[...].reshape(R, D)

    # fused QKV projection (weights pre-transposed, no in-kernel .T)
    qkv = jnp.dot(x, w_in_t, preferred_element_type=jnp.float32) + b_in
    q = qkv[:, :D] * scale
    k = qkv[:, D:2 * D]
    v = qkv[:, 2 * D:]

    q3 = q.reshape(Bt, S, D)        # leading-dim split only (cheap)
    k3 = k.reshape(Bt, S, D)
    v3 = v.reshape(Bt, S, D)

    # ---- multi-head attention: H batched contractions, no stack/transpose --
    ctx_heads = []
    for h in range(H):
        lo, hi = h * Dh, (h + 1) * Dh
        qh = q3[:, :, lo:hi]                        # (Bt, S, Dh) static slice
        kh = k3[:, :, lo:hi]
        vh = v3[:, :, lo:hi]
        s = jnp.einsum('bqd,bkd->bqk', qh, kh,
                       preferred_element_type=jnp.float32)       # (Bt, S, S)
        s = s - jnp.max(s, axis=-1, keepdims=True)
        p = jnp.exp(s)
        denom = jnp.sum(p, axis=-1, keepdims=True)
        r = pl.reciprocal(denom, approx=True)       # EUP vrcp
        r = r * (2.0 - denom * r)                   # one Newton-Raphson step
        p = p * r
        ctx_heads.append(jnp.einsum('bqk,bkd->bqd', p, vh,
                                    preferred_element_type=jnp.float32))
    ctx_flat = jnp.concatenate(ctx_heads, axis=-1).reshape(R, D)

    attn = jnp.dot(ctx_flat, w_out_t, preferred_element_type=jnp.float32) + b_out

    # ---- residual + LayerNorm 1 (dropout == identity in eval) --------------
    x1 = x + attn
    mu1 = jnp.mean(x1, axis=-1, keepdims=True)
    d1 = x1 - mu1
    var1 = jnp.mean(d1 * d1, axis=-1, keepdims=True)
    x1n = d1 * jax.lax.rsqrt(var1 + LN_EPS) * g1 + beta1

    # ---- bottleneck MLP (hidden dim zero-padded to 128 lanes) --------------
    h1 = jnp.dot(x1n, w1_t, preferred_element_type=jnp.float32) + bb1
    h1 = jnp.maximum(h1, 0.0)                       # ReLU
    mlp = jnp.dot(h1, w2_t, preferred_element_type=jnp.float32) + bb2

    # ---- residual + LayerNorm 2 ---------------------------------------------
    x2 = x1n + mlp
    mu2 = jnp.mean(x2, axis=-1, keepdims=True)
    d2 = x2 - mu2
    var2 = jnp.mean(d2 * d2, axis=-1, keepdims=True)
    x2n = d2 * jax.lax.rsqrt(var2 + LN_EPS) * g2 + beta2

    o_ref[...] = x2n.reshape(Bt, S, D)


# ---------------------------------------------------------------------------
# host-side parameter packing: one aligned f32 slab, one DMA
# ---------------------------------------------------------------------------
def _prepare_slab(params, dim):
    hidden = params["w1"].shape[0]
    hp = _round_up(hidden, 128)
    c1 = _round_up(dim, 128)
    W = _round_up(max(3 * dim, c1 + hp), 128)
    r1, r2, r3 = dim, 2 * dim, 2 * dim + hp
    Rtot = _round_up(r3 + 8, 8)

    slab = jnp.zeros((Rtot, W), jnp.float32)
    slab = slab.at[0:dim, 0:3 * dim].set(params["w_in"].T)          # (D, 3D)
    slab = slab.at[r1:r1 + dim, 0:dim].set(params["w_out"].T)       # (D, D)
    slab = slab.at[r1:r1 + dim, c1:c1 + hidden].set(params["w1"].T) # (D, hid)
    slab = slab.at[r2:r2 + hidden, 0:dim].set(params["w2"].T)       # (hid, D)
    slab = slab.at[r3 + 0, 0:3 * dim].set(params["b_in"][0])
    slab = slab.at[r3 + 1, 0:dim].set(params["b_out"][0])
    slab = slab.at[r3 + 2, 0:dim].set(params["g1"][0])
    slab = slab.at[r3 + 3, 0:dim].set(params["beta1"][0])
    slab = slab.at[r3 + 4, 0:hidden].set(params["bb1"][0])
    slab = slab.at[r3 + 5, 0:dim].set(params["bb2"][0])
    slab = slab.at[r3 + 6, 0:dim].set(params["g2"][0])
    slab = slab.at[r3 + 7, 0:dim].set(params["beta2"][0])
    return slab, hp


# ---------------------------------------------------------------------------
# tiling heuristic: biggest Bt that fits the row / VMEM budget (grid=1 when
# possible; grid only grows once tiles are already MXU-sized)
# ---------------------------------------------------------------------------
def _choose_batch_tile(B, S, D, H, *, target_rows=512, vmem_cap=24 << 20):
    def vmem_ok(bt):
        rows = bt * S
        scores = 3 * bt * H * S * S * 4          # scores + exp + softmax temps
        io = 2 * 2 * rows * D * 4                # double-buffered x in + out
        acts = 8 * rows * max(D, 128) * 4        # qkv/ctx/mlp temporaries
        return scores + io + acts < vmem_cap

    best = 1
    for bt in range(1, B + 1):
        if B % bt:
            continue
        if bt * S <= target_rows and vmem_ok(bt):
            best = bt
    return best


# ---------------------------------------------------------------------------
# wrapper
# ---------------------------------------------------------------------------
def adapter_with_attention(x, params, num_heads=NUM_HEADS):
    B, S, D = x.shape
    slab, hp = _prepare_slab(params, D)

    Bt = _choose_batch_tile(B, S, D, num_heads)
    grid = (B // Bt,)

    kernel = functools.partial(adapter_kernel, num_heads=num_heads,
                               hidden_padded=hp)

    return pl.pallas_call(
        kernel,
        out_shape=jax.ShapeDtypeStruct((B, S, D), jnp.float32),
        grid_spec=pl.GridSpec(
            grid=grid,
            in_specs=[pl.BlockSpec((Bt, S, D), lambda b: (b, 0, 0)),
                      pl.BlockSpec(slab.shape, lambda b: (0, 0))],
            out_specs=pl.BlockSpec((Bt, S, D), lambda b: (b, 0, 0)),
        ),
        compiler_params=pltpu.CompilerParams(
            dimension_semantics=("parallel",),
            vmem_limit_bytes=32 * 1024 * 1024,
        ),
    )(x, slab)


# ---------------------------------------------------------------------------
# deterministic parameter init (xavier_uniform_ weights, zero biases,
# LayerNorm gamma=1 / beta=0) -- PyTorch layout, packed/transposed in wrapper
# ---------------------------------------------------------------------------
def xavier_uniform(key, shape):
    fan_out, fan_in = shape
    bound = math.sqrt(6.0 / (fan_in + fan_out))
    return jax.random.uniform(key, shape, jnp.float32, -bound, bound)


def init_params(key, dim, reduction_factor=16):
    hidden = dim // reduction_factor
    k = jax.random.split(key, 4)
    return {
        "w_in":  xavier_uniform(k[0], (3 * dim, dim)),
        "b_in":  jnp.zeros((1, 3 * dim), jnp.float32),
        "w_out": xavier_uniform(k[1], (dim, dim)),
        "b_out": jnp.zeros((1, dim), jnp.float32),
        "g1":    jnp.ones((1, dim), jnp.float32),
        "beta1": jnp.zeros((1, dim), jnp.float32),
        "w1":    xavier_uniform(k[2], (hidden, dim)),
        "bb1":   jnp.zeros((1, hidden), jnp.float32),
        "w2":    xavier_uniform(k[3], (dim, hidden)),
        "bb2":   jnp.zeros((1, dim), jnp.float32),
        "g2":    jnp.ones((1, dim), jnp.float32),
        "beta2": jnp.zeros((1, dim), jnp.float32),
    }


# ---------------------------------------------------------------------------
# pure-JAX reference for correctness check
# ---------------------------------------------------------------------------
def reference(x, p):
    B, S, D = x.shape
    H, Dh = NUM_HEADS, D // NUM_HEADS
    qkv = jnp.einsum("bsd,ed->bse", x, p["w_in"]) + p["b_in"][0]
    q, k, v = qkv[..., :D], qkv[..., D:2 * D], qkv[..., 2 * D:]
    q = q.reshape(B, S, H, Dh).transpose(0, 2, 1, 3) / math.sqrt(Dh)
    k = k.reshape(B, S, H, Dh).transpose(0, 2, 1, 3)
    v = v.reshape(B, S, H, Dh).transpose(0, 2, 1, 3)
    s = jnp.einsum("bhqd,bhkd->bhqk", q, k)
    pweights = jax.nn.softmax(s, axis=-1)
    attn = jnp.einsum("bhqk,bhkd->bhqd", pweights, v)
    attn = attn.transpose(0, 2, 1, 3).reshape(B, S, D)
    attn = jnp.einsum("bsd,ed->bse", attn, p["w_out"]) + p["b_out"][0]

    def ln(y, g, b):
        mu = y.mean(-1, keepdims=True)
        var = ((y - mu) ** 2).mean(-1, keepdims=True)
        return (y - mu) / jnp.sqrt(var + LN_EPS) * g[0] + b[0]

    x1 = ln(x + attn, p["g1"], p["beta1"])
    h1 = jax.nn.relu(jnp.einsum("bsd,hd->bsh", x1, p["w1"]) + p["bb1"][0])
    mlp = jnp.einsum("bsh,dh->bsd", h1, p["w2"]) + p["bb2"][0]
    return ln(x1 + mlp, p["g2"], p["beta2"])


if __name__ == "__main__":
    B, S, D = 2, 8, 64          # dim=64 -> hidden_dim = 64 // 16 = 4
    key = jax.random.PRNGKey(0)
    kx, kp = jax.random.split(key)
    x = jax.random.normal(kx, (B, S, D), jnp.float32)
    params = init_params(kp, D)

    out = adapter_with_attention(x, params)
    out = jax.block_until_ready(out)

    ref = jax.block_until_ready(reference(x, params))
    np.testing.assert_allclose(np.asarray(out), np.asarray(ref),
                               rtol=1e-5, atol=1e-5)
    print("KERNEL_OK")
</pallas_src>

<mosaic_0001>
module attributes {stable_mosaic.version = 11 : i64} {
  func.func @adapter_kernel(%arg0: i32, %arg1: memref<2x8x64xf32, #tpu.memory_space<vmem>>, %arg2: memref<264x256xf32, #tpu.memory_space<vmem>>, %arg3: memref<2x8x64xf32, #tpu.memory_space<vmem>>) attributes {dimension_semantics = [#tpu.dimension_semantics<parallel>], iteration_bounds = array<i64: 1>, scalar_prefetch = 0 : i64, scratch_operands = 0 : i64, tpu.core_type = #tpu.core_type<tc>, window_params = [{transform_indices = @transform_0, window_bounds = array<i64: 2, 8, 64>}, {pipeline_mode = #tpu.pipeline_mode<synchronous>, transform_indices = @transform_1, window_bounds = array<i64: 264, 256>}, {transform_indices = @transform_2, window_bounds = array<i64: 2, 8, 64>}]} {
    %c0 = arith.constant 0 : index
    %c0_0 = arith.constant 0 : index
    %0 = vector.load %arg2[%c0, %c0_0] : memref<264x256xf32, #tpu.memory_space<vmem>>, vector<64x192xf32>
    %c64 = arith.constant 64 : index
    %c0_1 = arith.constant 0 : index
    %1 = vector.load %arg2[%c64, %c0_1] : memref<264x256xf32, #tpu.memory_space<vmem>>, vector<64x64xf32>
    %c64_2 = arith.constant 64 : index
    %c128 = arith.constant 128 : index
    %2 = vector.load %arg2[%c64_2, %c128] : memref<264x256xf32, #tpu.memory_space<vmem>>, vector<64x128xf32>
    %c128_3 = arith.constant 128 : index
    %c0_4 = arith.constant 0 : index
    %3 = vector.load %arg2[%c128_3, %c0_4] : memref<264x256xf32, #tpu.memory_space<vmem>>, vector<128x64xf32>
    %c256 = arith.constant 256 : index
    %c0_5 = arith.constant 0 : index
    %4 = vector.load %arg2[%c256, %c0_5] : memref<264x256xf32, #tpu.memory_space<vmem>>, vector<1x192xf32>
    %c257 = arith.constant 257 : index
    %c0_6 = arith.constant 0 : index
    %5 = vector.load %arg2[%c257, %c0_6] : memref<264x256xf32, #tpu.memory_space<vmem>>, vector<1x64xf32>
    %c258 = arith.constant 258 : index
    %c0_7 = arith.constant 0 : index
    %6 = vector.load %arg2[%c258, %c0_7] : memref<264x256xf32, #tpu.memory_space<vmem>>, vector<1x64xf32>
    %c259 = arith.constant 259 : index
    %c0_8 = arith.constant 0 : index
    %7 = vector.load %arg2[%c259, %c0_8] : memref<264x256xf32, #tpu.memory_space<vmem>>, vector<1x64xf32>
    %c260 = arith.constant 260 : index
    %c0_9 = arith.constant 0 : index
    %8 = vector.load %arg2[%c260, %c0_9] : memref<264x256xf32, #tpu.memory_space<vmem>>, vector<1x128xf32>
    %c261 = arith.constant 261 : index
    %c0_10 = arith.constant 0 : index
    %9 = vector.load %arg2[%c261, %c0_10] : memref<264x256xf32, #tpu.memory_space<vmem>>, vector<1x64xf32>
    %c262 = arith.constant 262 : index
    %c0_11 = arith.constant 0 : index
    %10 = vector.load %arg2[%c262, %c0_11] : memref<264x256xf32, #tpu.memory_space<vmem>>, vector<1x64xf32>
    %c263 = arith.constant 263 : index
    %c0_12 = arith.constant 0 : index
    %11 = vector.load %arg2[%c263, %c0_12] : memref<264x256xf32, #tpu.memory_space<vmem>>, vector<1x64xf32>
    %c0_13 = arith.constant 0 : index
    %c0_14 = arith.constant 0 : index
    %c0_15 = arith.constant 0 : index
    %12 = vector.load %arg1[%c0_13, %c0_14, %c0_15] : memref<2x8x64xf32, #tpu.memory_space<vmem>>, vector<2x8x64xf32>
    %13 = vector.shape_cast %12 : vector<2x8x64xf32> to vector<16x64xf32>
    %cst = arith.constant dense<0.000000e+00> : vector<16x192xf32>
    %14 = tpu.matmul %13, %0, %cst {dimension_numbers = #tpu.dot_dimension_numbers<[1], [0], [0], [1], [0, 0, 1, 1], [], []>} : vector<16x64xf32>, vector<64x192xf32>, vector<16x192xf32> -> vector<16x192xf32>
    %15 = vector.broadcast %4 : vector<1x192xf32> to vector<16x192xf32>
    %16 = arith.addf %14, %15 : vector<16x192xf32>
    %17 = vector.extract_strided_slice %16 {offsets = [0, 0], sizes = [16, 64], strides = [1, 1]} : vector<16x192xf32> to vector<16x64xf32>
    %cst_16 = arith.constant 2.500000e-01 : f32
    %18 = vector.broadcast %cst_16 : f32 to vector<16x64xf32>
    %19 = arith.mulf %17, %18 : vector<16x64xf32>
    %20 = vector.extract_strided_slice %16 {offsets = [0, 64], sizes = [16, 64], strides = [1, 1]} : vector<16x192xf32> to vector<16x64xf32>
    %21 = vector.extract_strided_slice %16 {offsets = [0, 128], sizes = [16, 64], strides = [1, 1]} : vector<16x192xf32> to vector<16x64xf32>
    %22 = vector.shape_cast %19 : vector<16x64xf32> to vector<2x8x64xf32>
    %23 = vector.shape_cast %20 : vector<16x64xf32> to vector<2x8x64xf32>
    %24 = vector.shape_cast %21 : vector<16x64xf32> to vector<2x8x64xf32>
    %25 = vector.extract_strided_slice %22 {offsets = [0, 0, 0], sizes = [2, 8, 16], strides = [1, 1, 1]} : vector<2x8x64xf32> to vector<2x8x16xf32>
    %26 = vector.extract_strided_slice %23 {offsets = [0, 0, 0], sizes = [2, 8, 16], strides = [1, 1, 1]} : vector<2x8x64xf32> to vector<2x8x16xf32>
    %27 = vector.extract_strided_slice %24 {offsets = [0, 0, 0], sizes = [2, 8, 16], strides = [1, 1, 1]} : vector<2x8x64xf32> to vector<2x8x16xf32>
    "tpu.trace_start"() <{level = 10 : i32, message = "bqd,bkd->bqk"}> : () -> ()
    %cst_17 = arith.constant dense<0.000000e+00> : vector<2x8x8xf32>
    %28 = tpu.matmul %25, %26, %cst_17 {dimension_numbers = #tpu.dot_dimension_numbers<[2], [2], [1], [1], [0, 0, 0, 1, 1, 1], [0], [0]>} : vector<2x8x16xf32>, vector<2x8x16xf32>, vector<2x8x8xf32> -> vector<2x8x8xf32>
    "tpu.trace_stop"() : () -> ()
    %cst_18 = arith.constant dense<0xFF800000> : vector<2x8xf32>
    %29 = vector.multi_reduction <maximumf>, %28, %cst_18 [2] : vector<2x8x8xf32> to vector<2x8xf32>
    %30 = vector.shape_cast %29 : vector<2x8xf32> to vector<2x8x1xf32>
    %31 = vector.broadcast %30 : vector<2x8x1xf32> to vector<2x8x8xf32>
    %32 = arith.subf %28, %31 : vector<2x8x8xf32>
    %33 = math.exp %32 : vector<2x8x8xf32>
    %cst_19 = arith.constant dense<0.000000e+00> : vector<2x8xf32>
    %34 = vector.multi_reduction <add>, %33, %cst_19 [2] : vector<2x8x8xf32> to vector<2x8xf32>
    %35 = vector.shape_cast %34 : vector<2x8xf32> to vector<2x8x1xf32>
    %36 = tpu.reciprocal %35 {approx = true} : vector<2x8x1xf32> -> vector<2x8x1xf32>
    %37 = arith.mulf %35, %36 : vector<2x8x1xf32>
    %cst_20 = arith.constant 2.000000e+00 : f32
    %38 = vector.broadcast %cst_20 : f32 to vector<2x8x1xf32>
    %39 = arith.subf %38, %37 : vector<2x8x1xf32>
    %40 = arith.mulf %36, %39 : vector<2x8x1xf32>
    %41 = vector.broadcast %40 : vector<2x8x1xf32> to vector<2x8x8xf32>
    %42 = arith.mulf %33, %41 : vector<2x8x8xf32>
    "tpu.trace_start"() <{level = 10 : i32, message = "bqk,bkd->bqd"}> : () -> ()
    %cst_21 = arith.constant dense<0.000000e+00> : vector<2x8x16xf32>
    %43 = tpu.matmul %42, %27, %cst_21 {dimension_numbers = #tpu.dot_dimension_numbers<[2], [1], [1], [2], [0, 0, 0, 1, 1, 2], [0], [0]>} : vector<2x8x8xf32>, vector<2x8x16xf32>, vector<2x8x16xf32> -> vector<2x8x16xf32>
    "tpu.trace_stop"() : () -> ()
    %44 = vector.extract_strided_slice %22 {offsets = [0, 0, 16], sizes = [2, 8, 16], strides = [1, 1, 1]} : vector<2x8x64xf32> to vector<2x8x16xf32>
    %45 = vector.extract_strided_slice %23 {offsets = [0, 0, 16], sizes = [2, 8, 16], strides = [1, 1, 1]} : vector<2x8x64xf32> to vector<2x8x16xf32>
    %46 = vector.extract_strided_slice %24 {offsets = [0, 0, 16], sizes = [2, 8, 16], strides = [1, 1, 1]} : vector<2x8x64xf32> to vector<2x8x16xf32>
    "tpu.trace_start"() <{level = 10 : i32, message = "bqd,bkd->bqk"}> : () -> ()
    %cst_22 = arith.constant dense<0.000000e+00> : vector<2x8x8xf32>
    %47 = tpu.matmul %44, %45, %cst_22 {dimension_numbers = #tpu.dot_dimension_numbers<[2], [2], [1], [1], [0, 0, 0, 1, 1, 1], [0], [0]>} : vector<2x8x16xf32>, vector<2x8x16xf32>, vector<2x8x8xf32> -> vector<2x8x8xf32>
    "tpu.trace_stop"() : () -> ()
    %cst_23 = arith.constant dense<0xFF800000> : vector<2x8xf32>
    %48 = vector.multi_reduction <maximumf>, %47, %cst_23 [2] : vector<2x8x8xf32> to vector<2x8xf32>
    %49 = vector.shape_cast %48 : vector<2x8xf32> to vector<2x8x1xf32>
    %50 = vector.broadcast %49 : vector<2x8x1xf32> to vector<2x8x8xf32>
    %51 = arith.subf %47, %50 : vector<2x8x8xf32>
    %52 = math.exp %51 : vector<2x8x8xf32>
    %cst_24 = arith.constant dense<0.000000e+00> : vector<2x8xf32>
    %53 = vector.multi_reduction <add>, %52, %cst_24 [2] : vector<2x8x8xf32> to vector<2x8xf32>
    %54 = vector.shape_cast %53 : vector<2x8xf32> to vector<2x8x1xf32>
    %55 = tpu.reciprocal %54 {approx = true} : vector<2x8x1xf32> -> vector<2x8x1xf32>
    %56 = arith.mulf %54, %55 : vector<2x8x1xf32>
    %cst_25 = arith.constant 2.000000e+00 : f32
    %57 = vector.broadcast %cst_25 : f32 to vector<2x8x1xf32>
    %58 = arith.subf %57, %56 : vector<2x8x1xf32>
    %59 = arith.mulf %55, %58 : vector<2x8x1xf32>
    %60 = vector.broadcast %59 : vector<2x8x1xf32> to vector<2x8x8xf32>
    %61 = arith.mulf %52, %60 : vector<2x8x8xf32>
    "tpu.trace_start"() <{level = 10 : i32, message = "bqk,bkd->bqd"}> : () -> ()
    %cst_26 = arith.constant dense<0.000000e+00> : vector<2x8x16xf32>
    %62 = tpu.matmul %61, %46, %cst_26 {dimension_numbers = #tpu.dot_dimension_numbers<[2], [1], [1], [2], [0, 0, 0, 1, 1, 2], [0], [0]>} : vector<2x8x8xf32>, vector<2x8x16xf32>, vector<2x8x16xf32> -> vector<2x8x16xf32>
    "tpu.trace_stop"() : () -> ()
    %63 = vector.extract_strided_slice %22 {offsets = [0, 0, 32], sizes = [2, 8, 16], strides = [1, 1, 1]} : vector<2x8x64xf32> to vector<2x8x16xf32>
    %64 = vector.extract_strided_slice %23 {offsets = [0, 0, 32], sizes = [2, 8, 16], strides = [1, 1, 1]} : vector<2x8x64xf32> to vector<2x8x16xf32>
    %65 = vector.extract_strided_slice %24 {offsets = [0, 0, 32], sizes = [2, 8, 16], strides = [1, 1, 1]} : vector<2x8x64xf32> to vector<2x8x16xf32>
    "tpu.trace_start"() <{level = 10 : i32, message = "bqd,bkd->bqk"}> : () -> ()
    %cst_27 = arith.constant dense<0.000000e+00> : vector<2x8x8xf32>
    %66 = tpu.matmul %63, %64, %cst_27 {dimension_numbers = #tpu.dot_dimension_numbers<[2], [2], [1], [1], [0, 0, 0, 1, 1, 1], [0], [0]>} : vector<2x8x16xf32>, vector<2x8x16xf32>, vector<2x8x8xf32> -> vector<2x8x8xf32>
    "tpu.trace_stop"() : () -> ()
    %cst_28 = arith.constant dense<0xFF800000> : vector<2x8xf32>
    %67 = vector.multi_reduction <maximumf>, %66, %cst_28 [2] : vector<2x8x8xf32> to vector<2x8xf32>
    %68 = vector.shape_cast %67 : vector<2x8xf32> to vector<2x8x1xf32>
    %69 = vector.broadcast %68 : vector<2x8x1xf32> to vector<2x8x8xf32>
    %70 = arith.subf %66, %69 : vector<2x8x8xf32>
    %71 = math.exp %70 : vector<2x8x8xf32>
    %cst_29 = arith.constant dense<0.000000e+00> : vector<2x8xf32>
    %72 = vector.multi_reduction <add>, %71, %cst_29 [2] : vector<2x8x8xf32> to vector<2x8xf32>
    %73 = vector.shape_cast %72 : vector<2x8xf32> to vector<2x8x1xf32>
    %74 = tpu.reciprocal %73 {approx = true} : vector<2x8x1xf32> -> vector<2x8x1xf32>
    %75 = arith.mulf %73, %74 : vector<2x8x1xf32>
    %cst_30 = arith.constant 2.000000e+00 : f32
    %76 = vector.broadcast %cst_30 : f32 to vector<2x8x1xf32>
    %77 = arith.subf %76, %75 : vector<2x8x1xf32>
    %78 = arith.mulf %74, %77 : vector<2x8x1xf32>
    %79 = vector.broadcast %78 : vector<2x8x1xf32> to vector<2x8x8xf32>
    %80 = arith.mulf %71, %79 : vector<2x8x8xf32>
    "tpu.trace_start"() <{level = 10 : i32, message = "bqk,bkd->bqd"}> : () -> ()
    %cst_31 = arith.constant dense<0.000000e+00> : vector<2x8x16xf32>
    %81 = tpu.matmul %80, %65, %cst_31 {dimension_numbers = #tpu.dot_dimension_numbers<[2], [1], [1], [2], [0, 0, 0, 1, 1, 2], [0], [0]>} : vector<2x8x8xf32>, vector<2x8x16xf32>, vector<2x8x16xf32> -> vector<2x8x16xf32>
    "tpu.trace_stop"() : () -> ()
    %82 = vector.extract_strided_slice %22 {offsets = [0, 0, 48], sizes = [2, 8, 16], strides = [1, 1, 1]} : vector<2x8x64xf32> to vector<2x8x16xf32>
    %83 = vector.extract_strided_slice %23 {offsets = [0, 0, 48], sizes = [2, 8, 16], strides = [1, 1, 1]} : vector<2x8x64xf32> to vector<2x8x16xf32>
    %84 = vector.extract_strided_slice %24 {offsets = [0, 0, 48], sizes = [2, 8, 16], strides = [1, 1, 1]} : vector<2x8x64xf32> to vector<2x8x16xf32>
    "tpu.trace_start"() <{level = 10 : i32, message = "bqd,bkd->bqk"}> : () -> ()
    %cst_32 = arith.constant dense<0.000000e+00> : vector<2x8x8xf32>
    %85 = tpu.matmul %82, %83, %cst_32 {dimension_numbers = #tpu.dot_dimension_numbers<[2], [2], [1], [1], [0, 0, 0, 1, 1, 1], [0], [0]>} : vector<2x8x16xf32>, vector<2x8x16xf32>, vector<2x8x8xf32> -> vector<2x8x8xf32>
    "tpu.trace_stop"() : () -> ()
    %cst_33 = arith.constant dense<0xFF800000> : vector<2x8xf32>
    %86 = vector.multi_reduction <maximumf>, %85, %cst_33 [2] : vector<2x8x8xf32> to vector<2x8xf32>
    %87 = vector.shape_cast %86 : vector<2x8xf32> to vector<2x8x1xf32>
    %88 = vector.broadcast %87 : vector<2x8x1xf32> to vector<2x8x8xf32>
    %89 = arith.subf %85, %88 : vector<2x8x8xf32>
    %90 = math.exp %89 : vector<2x8x8xf32>
    %cst_34 = arith.constant dense<0.000000e+00> : vector<2x8xf32>
    %91 = vector.multi_reduction <add>, %90, %cst_34 [2] : vector<2x8x8xf32> to vector<2x8xf32>
    %92 = vector.shape_cast %91 : vector<2x8xf32> to vector<2x8x1xf32>
    %93 = tpu.reciprocal %92 {approx = true} : vector<2x8x1xf32> -> vector<2x8x1xf32>
    %94 = arith.mulf %92, %93 : vector<2x8x1xf32>
    %cst_35 = arith.constant 2.000000e+00 : f32
    %95 = vector.broadcast %cst_35 : f32 to vector<2x8x1xf32>
    %96 = arith.subf %95, %94 : vector<2x8x1xf32>
    %97 = arith.mulf %93, %96 : vector<2x8x1xf32>
    %98 = vector.broadcast %97 : vector<2x8x1xf32> to vector<2x8x8xf32>
    %99 = arith.mulf %90, %98 : vector<2x8x8xf32>
    "tpu.trace_start"() <{level = 10 : i32, message = "bqk,bkd->bqd"}> : () -> ()
    %cst_36 = arith.constant dense<0.000000e+00> : vector<2x8x16xf32>
    %100 = tpu.matmul %99, %84, %cst_36 {dimension_numbers = #tpu.dot_dimension_numbers<[2], [1], [1], [2], [0, 0, 0, 1, 1, 2], [0], [0]>} : vector<2x8x8xf32>, vector<2x8x16xf32>, vector<2x8x16xf32> -> vector<2x8x16xf32>
    "tpu.trace_stop"() : () -> ()
    %101 = tpu.concatenate %43, %62, %81, %100 in 2 : vector<2x8x16xf32>, vector<2x8x16xf32>, vector<2x8x16xf32>, vector<2x8x16xf32> -> vector<2x8x64xf32>
    %102 = vector.shape_cast %101 : vector<2x8x64xf32> to vector<16x64xf32>
    %cst_37 = arith.constant dense<0.000000e+00> : vector<16x64xf32>
    %103 = tpu.matmul %102, %1, %cst_37 {dimension_numbers = #tpu.dot_dimension_numbers<[1], [0], [0], [1], [0, 0, 1, 1], [], []>} : vector<16x64xf32>, vector<64x64xf32>, vector<16x64xf32> -> vector<16x64xf32>
    %104 = vector.broadcast %5 : vector<1x64xf32> to vector<16x64xf32>
    %105 = arith.addf %103, %104 : vector<16x64xf32>
    %106 = arith.addf %13, %105 : vector<16x64xf32>
    %cst_38 = arith.constant dense<0.000000e+00> : vector<16xf32>
    %107 = vector.multi_reduction <add>, %106, %cst_38 [1] : vector<16x64xf32> to vector<16xf32>
    %108 = vector.shape_cast %107 : vector<16xf32> to vector<16x1xf32>
    %cst_39 = arith.constant 6.400000e+01 : f32
    %109 = vector.broadcast %cst_39 : f32 to vector<16x1xf32>
    %110 = arith.divf %108, %109 : vector<16x1xf32>
    %111 = vector.broadcast %110 : vector<16x1xf32> to vector<16x64xf32>
    %112 = arith.subf %106, %111 : vector<16x64xf32>
    %113 = arith.mulf %112, %112 : vector<16x64xf32>
    %cst_40 = arith.constant dense<0.000000e+00> : vector<16xf32>
    %114 = vector.multi_reduction <add>, %113, %cst_40 [1] : vector<16x64xf32> to vector<16xf32>
    %115 = vector.shape_cast %114 : vector<16xf32> to vector<16x1xf32>
    %cst_41 = arith.constant 6.400000e+01 : f32
    %116 = vector.broadcast %cst_41 : f32 to vector<16x1xf32>
    %117 = arith.divf %115, %116 : vector<16x1xf32>
    %cst_42 = arith.constant 9.99999974E-6 : f32
    %118 = vector.broadcast %cst_42 : f32 to vector<16x1xf32>
    %119 = arith.addf %117, %118 : vector<16x1xf32>
    %120 = math.rsqrt %119 : vector<16x1xf32>
    %121 = vector.broadcast %120 : vector<16x1xf32> to vector<16x64xf32>
    %122 = arith.mulf %112, %121 : vector<16x64xf32>
    %123 = vector.broadcast %6 : vector<1x64xf32> to vector<16x64xf32>
    %124 = arith.mulf %122, %123 : vector<16x64xf32>
    %125 = vector.broadcast %7 : vector<1x64xf32> to vector<16x64xf32>
    %126 = arith.addf %124, %125 : vector<16x64xf32>
    %cst_43 = arith.constant dense<0.000000e+00> : vector<16x128xf32>
    %127 = tpu.matmul %126, %2, %cst_43 {dimension_numbers = #tpu.dot_dimension_numbers<[1], [0], [0], [1], [0, 0, 1, 1], [], []>} : vector<16x64xf32>, vector<64x128xf32>, vector<16x128xf32> -> vector<16x128xf32>
    %128 = vector.broadcast %8 : vector<1x128xf32> to vector<16x128xf32>
    %129 = arith.addf %127, %128 : vector<16x128xf32>
    %cst_44 = arith.constant 0.000000e+00 : f32
    %130 = vector.broadcast %cst_44 : f32 to vector<16x128xf32>
    %131 = arith.maximumf %129, %130 : vector<16x128xf32>
    %cst_45 = arith.constant dense<0.000000e+00> : vector<16x64xf32>
    %132 = tpu.matmul %131, %3, %cst_45 {dimension_numbers = #tpu.dot_dimension_numbers<[1], [0], [0], [1], [0, 0, 1, 1], [], []>} : vector<16x128xf32>, vector<128x64xf32>, vector<16x64xf32> -> vector<16x64xf32>
    %133 = vector.broadcast %9 : vector<1x64xf32> to vector<16x64xf32>
    %134 = arith.addf %132, %133 : vector<16x64xf32>
    %135 = arith.addf %126, %134 : vector<16x64xf32>
    %cst_46 = arith.constant dense<0.000000e+00> : vector<16xf32>
    %136 = vector.multi_reduction <add>, %135, %cst_46 [1] : vector<16x64xf32> to vector<16xf32>
    %137 = vector.shape_cast %136 : vector<16xf32> to vector<16x1xf32>
    %cst_47 = arith.constant 6.400000e+01 : f32
    %138 = vector.broadcast %cst_47 : f32 to vector<16x1xf32>
    %139 = arith.divf %137, %138 : vector<16x1xf32>
    %140 = vector.broadcast %139 : vector<16x1xf32> to vector<16x64xf32>
    %141 = arith.subf %135, %140 : vector<16x64xf32>
    %142 = arith.mulf %141, %141 : vector<16x64xf32>
    %cst_48 = arith.constant dense<0.000000e+00> : vector<16xf32>
    %143 = vector.multi_reduction <add>, %142, %cst_48 [1] : vector<16x64xf32> to vector<16xf32>
    %144 = vector.shape_cast %143 : vector<16xf32> to vector<16x1xf32>
    %cst_49 = arith.constant 6.400000e+01 : f32
    %145 = vector.broadcast %cst_49 : f32 to vector<16x1xf32>
    %146 = arith.divf %144, %145 : vector<16x1xf32>
    %cst_50 = arith.constant 9.99999974E-6 : f32
    %147 = vector.broadcast %cst_50 : f32 to vector<16x1xf32>
    %148 = arith.addf %146, %147 : vector<16x1xf32>
    %149 = math.rsqrt %148 : vector<16x1xf32>
    %150 = vector.broadcast %149 : vector<16x1xf32> to vector<16x64xf32>
    %151 = arith.mulf %141, %150 : vector<16x64xf32>
    %152 = vector.broadcast %10 : vector<1x64xf32> to vector<16x64xf32>
    %153 = arith.mulf %151, %152 : vector<16x64xf32>
    %154 = vector.broadcast %11 : vector<1x64xf32> to vector<16x64xf32>
    %155 = arith.addf %153, %154 : vector<16x64xf32>
    %156 = vector.shape_cast %155 : vector<16x64xf32> to vector<2x8x64xf32>
    %c0_51 = arith.constant 0 : index
    %c0_52 = arith.constant 0 : index
    %c0_53 = arith.constant 0 : index
    %157 = vector.load %arg3[%c0_51, %c0_52, %c0_53] : memref<2x8x64xf32, #tpu.memory_space<vmem>>, vector<2x8x64xf32>
    tpu.vector_store %arg3[%c0_51, %c0_52, %c0_53], %156 {strides = array<i32>} : memref<2x8x64xf32, #tpu.memory_space<vmem>>, vector<2x8x64xf32>,
    return
  }
  func.func @transform_0(%arg0: i32) -> (i32, i32, i32) {
    %c0_i32 = arith.constant 0 : i32
    %c0_i32_0 = arith.constant 0 : i32
    %c0_i32_1 = arith.constant 0 : i32
    return %arg0, %c0_i32, %c0_i32_0 : i32, i32, i32
  }
  func.func @transform_1(%arg0: i32) -> (i32, i32) {
    %c0_i32 = arith.constant 0 : i32
    %c0_i32_0 = arith.constant 0 : i32
    %c0_i32_1 = arith.constant 0 : i32
    return %c0_i32, %c0_i32_0 : i32, i32
  }
  func.func @transform_2(%arg0: i32) -> (i32, i32, i32) {
    %c0_i32 = arith.constant 0 : i32
    %c0_i32_0 = arith.constant 0 : i32
    %c0_i32_1 = arith.constant 0 : i32
    return %arg0, %c0_i32, %c0_i32_0 : i32, i32, i32
  }
}

</mosaic_0001>

<llo_original>
// kernel: tpu_custom_call.1
$region0: #{tpu_custom_call.1}
  #allocation0 [shape = 'u32[]', space=smem, size = 0x4, offset = 0x4, fixed_abs, tag = 'smem constant byte address 0x4 - core index']
  #allocation1 [shape = 'u32[144,128]{1,0:T(1,128)}', space=vmem, size = 0x12000, scoped, tag = 'internal scratch']
  %s0 = inlined_call_operand.hbm [shape: f32[2,8,64], index: 0, kind: input, shape index: {}]
  %s1 = inlined_call_operand.hbm [shape: f32[264,256], index: 1, kind: input, shape index: {}]
  %s2 = inlined_call_operand.hbm [shape: f32[2,8,64], index: 2, kind: output, shape index: {}]
  %s3 = sld [smem:[#allocation0]]
  $region26: #{tpu_custom_call.1} parent=0
    _
  %s5 = ssub.s32 1, %s3
  %s6 = scalar_select 0, %s5, %s3
  $region1: #{tpu_custom_call.1} parent=0
    #allocation2 [shape = 'u8[8192]{0}', space=vmem, size = 0x2000, scoped, tag = 'input window, operand 0, single buffered']
    #allocation3 [shape = 's32[1]{0}', space=sflag, size = 0x4, scoped, tag = 'scoped memory for tpu_custom_call.1']
    #allocation4 [shape = 's32[1]{0}', space=sflag, size = 0x4, scoped, tag = 'scoped memory for tpu_custom_call.1']
    #allocation5 [shape = 'u8[270336]{0}', space=vmem, size = 0x42000, scoped, tag = 'input window, operand 1, single buffered']
    #allocation6 [shape = 's32[1]{0}', space=sflag, size = 0x4, scoped, tag = 'scoped memory for tpu_custom_call.1']
    #allocation7 [shape = 'u8[8192]{0}', space=vmem, size = 0x2000, scoped, tag = 'output window, operand 0, single buffered']
    %7 = vsyncpa [#allocation3], 0
    %8 = vsyncpa [#allocation6], 0
    %9 = vsyncpa [#allocation4], 0
    // Predicated region
    $region2: #{tpu_custom_call.1} parent=1 // pred_check
      _
    $region3: #{tpu_custom_call.1} parent=1 // pred_check_branch
      %11 = sbr.rel (0) target = $region5
    $region4: #{tpu_custom_call.1} parent=1 // pred_region
      %s13 = ssub.s32 256, 256
      %14 = vsyncadd [#allocation3], %s13
      %s15 = sshll.u32 [#allocation2], 4
      %s16 = int_to_ptr.vmem [resolvable:$true] %s15
      %21 = dma.hbm_to_vmem [thread:$0]  %s0, 256, %s16, [#allocation3], 128, 128, 8
    $region5: #{tpu_custom_call.1} parent=1 // pred_fallthru
      _
    // Predicated region
    $region6: #{tpu_custom_call.1} parent=1 // pred_check
      _
    $region7: #{tpu_custom_call.1} parent=1 // pred_check_branch
      %23 = sbr.rel (0) target = $region9
    $region8: #{tpu_custom_call.1} parent=1 // pred_region
      %s25 = ssub.s32 8448, 8448
      %26 = vsyncadd [#allocation6], %s25
      %s27 = sshll.u32 [#allocation5], 4
      %s28 = int_to_ptr.vmem [resolvable:$true] %s27
      %33 = dma.hbm_to_vmem [thread:$0]  %s1, 8448, %s28, [#allocation6], 256, 256, 16
    $region9: #{tpu_custom_call.1} parent=1 // pred_fallthru
      _
    // Predicated region
    $region10: #{tpu_custom_call.1} parent=1 // pred_check
      _
    $region11: #{tpu_custom_call.1} parent=1 // pred_check_branch
      %35 = sbr.rel (0) target = $region13
    $region12: #{tpu_custom_call.1} parent=1 // pred_region
      %36 = dma.done [#allocation3], 256
    $region13: #{tpu_custom_call.1} parent=1 // pred_fallthru
      _
    // Predicated region
    $region14: #{tpu_custom_call.1} parent=1 // pred_check
      _
    $region15: #{tpu_custom_call.1} parent=1 // pred_check_branch
      %38 = sbr.rel (0) target = $region17
    $region16: #{tpu_custom_call.1} parent=1 // pred_region
      %39 = dma.done [#allocation6], 8448
    $region17: #{tpu_custom_call.1} parent=1 // pred_fallthru
      _
    %v40 = vld [vmem:[#allocation5] sm:$0xff]
    %v41 = vld [vmem:[#allocation5 + $0x8] sm:$0xff]
    %v42 = vld [vmem:[#allocation5 + $0x10] sm:$0xff]
    %v43 = vld [vmem:[#allocation5 + $0x18] sm:$0xff]
    %v44 = vld [vmem:[#allocation5 + $0x20] sm:$0xff]
    %v45 = vld [vmem:[#allocation5 + $0x28] sm:$0xff]
    %v46 = vld [vmem:[#allocation5 + $0x30] sm:$0xff]
    %v47 = vld [vmem:[#allocation5 + $0x38] sm:$0xff]
    %v48 = vld [vmem:[#allocation5 + $0x40] sm:$0xff]
    %v49 = vld [vmem:[#allocation5 + $0x48] sm:$0xff]
    %v50 = vld [vmem:[#allocation5 + $0x50] sm:$0xff]
    %v51 = vld [vmem:[#allocation5 + $0x58] sm:$0xff]
    %v52 = vld [vmem:[#allocation5 + $0x60] sm:$0xff]
    %v53 = vld [vmem:[#allocation5 + $0x68] sm:$0xff]
    %v54 = vld [vmem:[#allocation5 + $0x70] sm:$0xff]
    %v55 = vld [vmem:[#allocation5 + $0x78] sm:$0xff]
    %v56 = vld [vmem:[#allocation5 + $0x80] sm:$0xff]
    %v57 = vld [vmem:[#allocation5 + $0x90] sm:$0xff]
    %v58 = vld [vmem:[#allocation5 + $0xa0] sm:$0xff]
    %v59 = vld [vmem:[#allocation5 + $0xb0] sm:$0xff]
    %v60 = vld [vmem:[#allocation5 + $0xc0] sm:$0xff]
    %v61 = vld [vmem:[#allocation5 + $0xd0] sm:$0xff]
    %v62 = vld [vmem:[#allocation5 + $0xe0] sm:$0xff]
    %v63 = vld [vmem:[#allocation5 + $0xf0] sm:$0xff]
    %v64 = vld [vmem:[#allocation5 + $0x88] sm:$0xff]
    %v65 = vld [vmem:[#allocation5 + $0x98] sm:$0xff]
    %v66 = vld [vmem:[#allocation5 + $0xa8] sm:$0xff]
    %v67 = vld [vmem:[#allocation5 + $0xb8] sm:$0xff]
    %v68 = vld [vmem:[#allocation5 + $0xc8] sm:$0xff]
    %v69 = vld [vmem:[#allocation5 + $0xd8] sm:$0xff]
    %v70 = vld [vmem:[#allocation5 + $0xe8] sm:$0xff]
    %v71 = vld [vmem:[#allocation5 + $0xf8] sm:$0xff]
    %v72 = vld [vmem:[#allocation5 + $0x100] sm:$0xff]
    %v73 = vld [vmem:[#allocation5 + $0x110] sm:$0xff]
    %v74 = vld [vmem:[#allocation5 + $0x120] sm:$0xff]
    %v75 = vld [vmem:[#allocation5 + $0x130] sm:$0xff]
    %v76 = vld [vmem:[#allocation5 + $0x140] sm:$0xff]
    %v77 = vld [vmem:[#allocation5 + $0x150] sm:$0xff]
    %v78 = vld [vmem:[#allocation5 + $0x160] sm:$0xff]
    %v79 = vld [vmem:[#allocation5 + $0x170] sm:$0xff]
    %v80 = vld [vmem:[#allocation5 + $0x180] sm:$0xff]
    %v81 = vld [vmem:[#allocation5 + $0x190] sm:$0xff]
    %v82 = vld [vmem:[#allocation5 + $0x1a0] sm:$0xff]
    %v83 = vld [vmem:[#allocation5 + $0x1b0] sm:$0xff]
    %v84 = vld [vmem:[#allocation5 + $0x1c0] sm:$0xff]
    %v85 = vld [vmem:[#allocation5 + $0x1d0] sm:$0xff]
    %v86 = vld [vmem:[#allocation5 + $0x1e0] sm:$0xff]
    %v87 = vld [vmem:[#allocation5 + $0x1f0] sm:$0xff]
    %s88 = scalar_lea.vmem [#allocation5], 512
    %v89 = vld [vmem:[%s88] ss:$8 sm:$0x3]
    %v90 = vld [vmem:[#allocation5 + $0x201] ss:$0 sm:$0xff]
    %v91 = vld [vmem:[#allocation5 + $0x202] ss:$0 sm:$0xff]
    %v92 = vld [vmem:[#allocation5 + $0x203] ss:$0 sm:$0xff]
    %v93 = vld [vmem:[#allocation5 + $0x204] ss:$0 sm:$0xff]
    %v94 = vld [vmem:[#allocation5 + $0x205] ss:$0 sm:$0xff]
    %v95 = vld [vmem:[#allocation5 + $0x206] ss:$0 sm:$0xff]
    %v96 = vld [vmem:[#allocation5 + $0x207] ss:$0 sm:$0xff]
    %v97 = vld [vmem:[#allocation2] sm:$0xff]
    %v98 = vld [vmem:[#allocation2 + $0x8] sm:$0xff]
    %v100 = vlaneseq
    %v101 = vshrl.u32 %v100, 7
    %v102 = vsub.s32 0, %v101
    %v103 = vrot.slane %v89, %v102
    %v104 = vlaneseq
    %v105 = vshrl.u32 %v104, 7
    %v106 = vsub.s32 1, %v105
    %v107 = vrot.slane %v89, %v106
    %vm110 = vcmask 523264
    %v112 = vsel %vm110, %v97, 0
    %v115 = vsel %vm110, %v98, 0
    %117 = vmatprep.subr.mxu0 0.0
    %118 = vmatpush1.msra.mxu0 0.0
    %119 = vmatprep.subr.mxu0 0.0
    %120 = vmatpush1.msra.mxu0 0.0
    %121 = vmatprep.subr.mxu0 0.0
    %122 = vmatpush1.msra.mxu0 0.0
    %123 = vmatprep.subr.mxu0 0.0
    %124 = vmatpush1.msra.mxu0 0.0
    %125 = vmatprep.subr.mxu0 0.0
    %126 = vmatpush1.msra.mxu0 0.0
    %127 = vmatprep.subr.mxu0 0.0
    %128 = vmatpush1.msra.mxu0 0.0
    %129 = vmatprep.subr.mxu0 0.0
    %130 = vmatpush1.msra.mxu0 0.0
    %131 = vmatprep.subr.mxu0 0.0
    %132 = vmatpush1.msra.mxu0 0.0
    %133 = vmatprep.subr.mxu0 %v55
    %134 = vmatpush1.msra.mxu0 %v54
    %135 = vmatprep.subr.mxu0 %v53
    %136 = vmatpush1.msra.mxu0 %v52
    %137 = vmatprep.subr.mxu0 %v51
    %138 = vmatpush1.msra.mxu0 %v50
    %139 = vmatprep.subr.mxu0 %v49
    %140 = vmatpush1.msra.mxu0 %v48
    %141 = vmatprep.subr.mxu0 %v47
    %142 = vmatpush1.msra.mxu0 %v46
    %143 = vmatprep.subr.mxu0 %v45
    %144 = vmatpush1.msra.mxu0 %v44
    %145 = vmatprep.subr.mxu0 %v43
    %146 = vmatpush1.msra.mxu0 %v42
    %147 = vmatprep.subr.mxu0 %v41
    %148 = vmatpush1.msra.mxu0 %v40
    %149 = vmatprep.subr.mxu0 0.0
    %150 = vmatpush2.msra.mxu0 0.0
    %151 = vmatprep.subr.mxu0 0.0
    %152 = vmatpush2.msra.mxu0 0.0
    %153 = vmatprep.subr.mxu0 0.0
    %154 = vmatpush2.msra.mxu0 0.0
    %155 = vmatprep.subr.mxu0 0.0
    %156 = vmatpush2.msra.mxu0 0.0
    %157 = vmatprep.subr.mxu0 0.0
    %158 = vmatpush2.msra.mxu0 0.0
    %159 = vmatprep.subr.mxu0 0.0
    %160 = vmatpush2.msra.mxu0 0.0
    %161 = vmatprep.subr.mxu0 0.0
    %162 = vmatpush2.msra.mxu0 0.0
    %163 = vmatprep.subr.mxu0 0.0
    %164 = vmatpush2.msra.mxu0 0.0
    %165 = vmatprep.subr.mxu0 0.0
    %166 = vmatpush2.msra.mxu0 0.0
    %167 = vmatprep.subr.mxu0 0.0
    %168 = vmatpush2.msra.mxu0 0.0
    %169 = vmatprep.subr.mxu0 0.0
    %170 = vmatpush2.msra.mxu0 0.0
    %171 = vmatprep.subr.mxu0 0.0
    %172 = vmatpush2.msra.mxu0 0.0
    %173 = vmatprep.subr.mxu0 0.0
    %174 = vmatpush2.msra.mxu0 0.0
    %175 = vmatprep.subr.mxu0 0.0
    %176 = vmatpush2.msra.mxu0 0.0
    %177 = vmatprep.subr.mxu0 0.0
    %178 = vmatpush2.msra.mxu0 0.0
    %179 = vmatprep.subr.mxu0 0.0
    %180 = vmatpush2.msra.mxu0 0.0
    %181 = vmatprep.mubr.f32.mxu0 0.0
    %182 = vmatmul.mubr.f32.gmra.mxu0 %v112
    %v183 = vpop.f32.mrf.mxu0
    %v184 = vadd.f32 %v103, %v183
    %v185 = vpop.f32.mrf.mxu0
    %v186 = vadd.f32 %v107, %v185
    %187 = vmatprep.mubr.f32.mxu0 0.0
    %188 = vmatmul.mubr.f32.gmra.mxu0 %v115
    %v189 = vpop.f32.mrf.mxu0
    %v190 = vadd.f32 %v103, %v189
    %v191 = vpop.f32.mrf.mxu0
    %v192 = vadd.f32 %v107, %v191
    %193 = vdwg.mxu0
    %v194 = vmul.f32 %v184, 0.25
    %v195 = vmul.f32 %v190, 0.25
    %197 = vrot.lane.b32.xlu0 %v184, 64
    %v198 = vpop.permute.xlu0 %197
    %vm199 = vcmask 130048
    %v201 = vsel %vm199, %v194, 0
    %v203 = vsel %vm199, %v198, 0
    %205 = vmatprep.subr.mxu0 0.0
    %206 = vmatpush1.xpose.msra.mxu0 0.0
    %207 = vmatprep.subr.mxu0 0.0
    %208 = vmatpush1.xpose.msra.mxu0 0.0
    %209 = vmatprep.subr.mxu0 0.0
    %210 = vmatpush1.xpose.msra.mxu0 0.0
    %211 = vmatprep.subr.mxu0 0.0
    %212 = vmatpush1.xpose.msra.mxu0 0.0
    %213 = vmatprep.subr.mxu0 0.0
    %214 = vmatpush1.xpose.msra.mxu0 0.0
    %215 = vmatprep.subr.mxu0 0.0
    %216 = vmatpush1.xpose.msra.mxu0 0.0
    %217 = vmatprep.subr.mxu0 0.0
    %218 = vmatpush1.xpose.msra.mxu0 0.0
    %219 = vmatprep.subr.mxu0 0.0
    %220 = vmatpush1.xpose.msra.mxu0 0.0
    %221 = vmatprep.subr.mxu0 0.0
    %222 = vmatpush1.xpose.msra.mxu0 0.0
    %223 = vmatprep.subr.mxu0 0.0
    %224 = vmatpush1.xpose.msra.mxu0 0.0
    %225 = vmatprep.subr.mxu0 0.0
    %226 = vmatpush1.xpose.msra.mxu0 0.0
    %227 = vmatprep.subr.mxu0 0.0
    %228 = vmatpush1.xpose.msra.mxu0 0.0
    %229 = vmatprep.subr.mxu0 0.0
    %230 = vmatpush1.xpose.msra.mxu0 0.0
    %231 = vmatprep.subr.mxu0 0.0
    %232 = vmatpush1.xpose.msra.mxu0 0.0
    %233 = vmatprep.subr.mxu0 0.0
    %234 = vmatpush1.xpose.msra.mxu0 0.0
    %235 = vmatprep.subr.mxu0 0.0
    %236 = vmatpush1.xpose.msra.mxu0 %v203
    %237 = vmatprep.subr.mxu0 0.0
    %238 = vmatpush2.xpose.msra.mxu0 0.0
    %239 = vmatprep.subr.mxu0 0.0
    %240 = vmatpush2.xpose.msra.mxu0 0.0
    %241 = vmatprep.subr.mxu0 0.0
    %242 = vmatpush2.xpose.msra.mxu0 0.0
    %243 = vmatprep.subr.mxu0 0.0
    %244 = vmatpush2.xpose.msra.mxu0 0.0
    %245 = vmatprep.subr.mxu0 0.0
    %246 = vmatpush2.xpose.msra.mxu0 0.0
    %247 = vmatprep.subr.mxu0 0.0
    %248 = vmatpush2.xpose.msra.mxu0 0.0
    %249 = vmatprep.subr.mxu0 0.0
    %250 = vmatpush2.xpose.msra.mxu0 0.0
    %251 = vmatprep.subr.mxu0 0.0
    %252 = vmatpush2.xpose.msra.mxu0 0.0
    %253 = vmatprep.subr.mxu0 0.0
    %254 = vmatpush2.xpose.msra.mxu0 0.0
    %255 = vmatprep.subr.mxu0 0.0
    %256 = vmatpush2.xpose.msra.mxu0 0.0
    %257 = vmatprep.subr.mxu0 0.0
    %258 = vmatpush2.xpose.msra.mxu0 0.0
    %259 = vmatprep.subr.mxu0 0.0
    %260 = vmatpush2.xpose.msra.mxu0 0.0
    %261 = vmatprep.subr.mxu0 0.0
    %262 = vmatpush2.xpose.msra.mxu0 0.0
    %263 = vmatprep.subr.mxu0 0.0
    %264 = vmatpush2.xpose.msra.mxu0 0.0
    %265 = vmatprep.subr.mxu0 0.0
    %266 = vmatpush2.xpose.msra.mxu0 0.0
    %267 = vmatprep.subr.mxu0 0.0
    %268 = vmatpush2.xpose.msra.mxu0 0.0
    %269 = vmatprep.mubr.f32.mxu0 0.0
    %270 = vmatmul.mubr.f32.gmra.mxu0 %v201
    %v271 = vpop.f32.mrf.mxu0
    %v272 = vadd.f32 0.0, %v271
    %v273 = vpop.f32.mrf.mxu0
    %274 = vdwg.mxu0
    %276 = vrot.lane.b32.xlu0 %v190, 64
    %v277 = vpop.permute.xlu0 %276
    %v279 = vsel %vm199, %v195, 0
    %v281 = vsel %vm199, %v277, 0
    %283 = vmatprep.subr.mxu0 0.0
    %284 = vmatpush1.xpose.msra.mxu0 0.0
    %285 = vmatprep.subr.mxu0 0.0
    %286 = vmatpush1.xpose.msra.mxu0 0.0
    %287 = vmatprep.subr.mxu0 0.0
    %288 = vmatpush1.xpose.msra.mxu0 0.0
    %289 = vmatprep.subr.mxu0 0.0
    %290 = vmatpush1.xpose.msra.mxu0 0.0
    %291 = vmatprep.subr.mxu0 0.0
    %292 = vmatpush1.xpose.msra.mxu0 0.0
    %293 = vmatprep.subr.mxu0 0.0
    %294 = vmatpush1.xpose.msra.mxu0 0.0
    %295 = vmatprep.subr.mxu0 0.0
    %296 = vmatpush1.xpose.msra.mxu0 0.0
    %297 = vmatprep.subr.mxu0 0.0
    %298 = vmatpush1.xpose.msra.mxu0 0.0
    %299 = vmatprep.subr.mxu0 0.0
    %300 = vmatpush1.xpose.msra.mxu0 0.0
    %301 = vmatprep.subr.mxu0 0.0
    %302 = vmatpush1.xpose.msra.mxu0 0.0
    %303 = vmatprep.subr.mxu0 0.0
    %304 = vmatpush1.xpose.msra.mxu0 0.0
    %305 = vmatprep.subr.mxu0 0.0
    %306 = vmatpush1.xpose.msra.mxu0 0.0
    %307 = vmatprep.subr.mxu0 0.0
    %308 = vmatpush1.xpose.msra.mxu0 0.0
    %309 = vmatprep.subr.mxu0 0.0
    %310 = vmatpush1.xpose.msra.mxu0 0.0
    %311 = vmatprep.subr.mxu0 0.0
    %312 = vmatpush1.xpose.msra.mxu0 0.0
    %313 = vmatprep.subr.mxu0 0.0
    %314 = vmatpush1.xpose.msra.mxu0 %v281
    %315 = vmatprep.subr.mxu0 0.0
    %316 = vmatpush2.xpose.msra.mxu0 0.0
    %317 = vmatprep.subr.mxu0 0.0
    %318 = vmatpush2.xpose.msra.mxu0 0.0
    %319 = vmatprep.subr.mxu0 0.0
    %320 = vmatpush2.xpose.msra.mxu0 0.0
    %321 = vmatprep.subr.mxu0 0.0
    %322 = vmatpush2.xpose.msra.mxu0 0.0
    %323 = vmatprep.subr.mxu0 0.0
    %324 = vmatpush2.xpose.msra.mxu0 0.0
    %325 = vmatprep.subr.mxu0 0.0
    %326 = vmatpush2.xpose.msra.mxu0 0.0
    %327 = vmatprep.subr.mxu0 0.0
    %328 = vmatpush2.xpose.msra.mxu0 0.0
    %329 = vmatprep.subr.mxu0 0.0
    %330 = vmatpush2.xpose.msra.mxu0 0.0
    %331 = vmatprep.subr.mxu0 0.0
    %332 = vmatpush2.xpose.msra.mxu0 0.0
    %333 = vmatprep.subr.mxu0 0.0
    %334 = vmatpush2.xpose.msra.mxu0 0.0
    %335 = vmatprep.subr.mxu0 0.0
    %336 = vmatpush2.xpose.msra.mxu0 0.0
    %337 = vmatprep.subr.mxu0 0.0
    %338 = vmatpush2.xpose.msra.mxu0 0.0
    %339 = vmatprep.subr.mxu0 0.0
    %340 = vmatpush2.xpose.msra.mxu0 0.0
    %341 = vmatprep.subr.mxu0 0.0
    %342 = vmatpush2.xpose.msra.mxu0 0.0
    %343 = vmatprep.subr.mxu0 0.0
    %344 = vmatpush2.xpose.msra.mxu0 0.0
    %345 = vmatprep.subr.mxu0 0.0
    %346 = vmatpush2.xpose.msra.mxu0 0.0
    %347 = vmatprep.mubr.f32.mxu0 0.0
    %348 = vmatmul.mubr.f32.gmra.mxu0 %v279
    %v349 = vpop.f32.mrf.mxu0
    %v350 = vadd.f32 0.0, %v349
    %v351 = vpop.f32.mrf.mxu0
    %352 = vdwg.mxu0
    %vm353 = vcmask 64512
    %v354 = vsel %vm353, %v272, -inf
    %355 = vmax.xlane.f32.xlu0 %v354
    %v356 = vpop.xlane.xlu0 %355
    %v357 = vsel %vm353, %v350, -inf
    %358 = vmax.xlane.f32.xlu0 %v357
    %v359 = vpop.xlane.xlu0 %358
    %v360 = vsub.f32 %v272, %v356
    %v361 = vsub.f32 %v350, %v359
    %v362 = vmul.f32 %v360, 1.442695
    %v363 = vpow.pop %v362
    %v364 = vmul.f32 %v361, 1.442695
    %v365 = vpow.pop %v364
    %v366 = vsel %vm353, %v363, 0.0
    %367 = vadd.xlane.f32.xlu0 %v366
    %v368 = vpop.xlane.xlu0 %367
    %v369 = vsel %vm353, %v365, 0.0
    %370 = vadd.xlane.f32.xlu0 %v369
    %v371 = vpop.xlane.xlu0 %370
    %v372 = vrcp.pop %v368
    %v373 = vrcp.pop %v371
    %v374 = vmul.f32 %v368, %v372
    %v375 = vmul.f32 %v371, %v373
    %v376 = vsub.f32 2.0, %v374
    %v377 = vsub.f32 2.0, %v375
    %v378 = vmul.f32 %v372, %v376
    %v379 = vmul.f32 %v373, %v377
    %v380 = vmul.f32 %v363, %v378
    %v381 = vmul.f32 %v365, %v379
    %v383 = vsel %vm353, %v380, 0
    %385 = vmatprep.subr.mxu0 0.0
    %386 = vmatpush1.msra.mxu0 0.0
    %387 = vmatprep.subr.mxu0 0.0
    %388 = vmatpush1.msra.mxu0 0.0
    %389 = vmatprep.subr.mxu0 0.0
    %390 = vmatpush1.msra.mxu0 0.0
    %391 = vmatprep.subr.mxu0 0.0
    %392 = vmatpush1.msra.mxu0 0.0
    %393 = vmatprep.subr.mxu0 0.0
    %394 = vmatpush1.msra.mxu0 0.0
    %395 = vmatprep.subr.mxu0 0.0
    %396 = vmatpush1.msra.mxu0 0.0
    %397 = vmatprep.subr.mxu0 0.0
    %398 = vmatpush1.msra.mxu0 0.0
    %399 = vmatprep.subr.mxu0 0.0
    %400 = vmatpush1.msra.mxu0 0.0
    %401 = vmatprep.subr.mxu0 0.0
    %402 = vmatpush1.msra.mxu0 0.0
    %403 = vmatprep.subr.mxu0 0.0
    %404 = vmatpush1.msra.mxu0 0.0
    %405 = vmatprep.subr.mxu0 0.0
    %406 = vmatpush1.msra.mxu0 0.0
    %407 = vmatprep.subr.mxu0 0.0
    %408 = vmatpush1.msra.mxu0 0.0
    %409 = vmatprep.subr.mxu0 0.0
    %410 = vmatpush1.msra.mxu0 0.0
    %411 = vmatprep.subr.mxu0 0.0
    %412 = vmatpush1.msra.mxu0 0.0
    %413 = vmatprep.subr.mxu0 0.0
    %414 = vmatpush1.msra.mxu0 0.0
    %415 = vmatprep.subr.mxu0 0.0
    %416 = vmatpush1.msra.mxu0 %v186
    %417 = vmatprep.subr.mxu0 0.0
    %418 = vmatpush2.msra.mxu0 0.0
    %419 = vmatprep.subr.mxu0 0.0
    %420 = vmatpush2.msra.mxu0 0.0
    %421 = vmatprep.subr.mxu0 0.0
    %422 = vmatpush2.msra.mxu0 0.0
    %423 = vmatprep.subr.mxu0 0.0
    %424 = vmatpush2.msra.mxu0 0.0
    %425 = vmatprep.subr.mxu0 0.0
    %426 = vmatpush2.msra.mxu0 0.0
    %427 = vmatprep.subr.mxu0 0.0
    %428 = vmatpush2.msra.mxu0 0.0
    %429 = vmatprep.subr.mxu0 0.0
    %430 = vmatpush2.msra.mxu0 0.0
    %431 = vmatprep.subr.mxu0 0.0
    %432 = vmatpush2.msra.mxu0 0.0
    %433 = vmatprep.subr.mxu0 0.0
    %434 = vmatpush2.msra.mxu0 0.0
    %435 = vmatprep.subr.mxu0 0.0
    %436 = vmatpush2.msra.mxu0 0.0
    %437 = vmatprep.subr.mxu0 0.0
    %438 = vmatpush2.msra.mxu0 0.0
    %439 = vmatprep.subr.mxu0 0.0
    %440 = vmatpush2.msra.mxu0 0.0
    %441 = vmatprep.subr.mxu0 0.0
    %442 = vmatpush2.msra.mxu0 0.0
    %443 = vmatprep.subr.mxu0 0.0
    %444 = vmatpush2.msra.mxu0 0.0
    %445 = vmatprep.subr.mxu0 0.0
    %446 = vmatpush2.msra.mxu0 0.0
    %447 = vmatprep.subr.mxu0 0.0
    %448 = vmatpush2.msra.mxu0 0.0
    %449 = vmatprep.mubr.f32.mxu0 0.0
    %450 = vmatmul.mubr.f32.gmra.mxu0 %v383
    %v451 = vpop.f32.mrf.mxu0
    %v452 = vadd.f32 0.0, %v451
    %v453 = vpop.f32.mrf.mxu0
    %454 = vdwg.mxu0
    %v456 = vsel %vm353, %v381, 0
    %458 = vmatprep.subr.mxu0 0.0
    %459 = vmatpush1.msra.mxu0 0.0
    %460 = vmatprep.subr.mxu0 0.0
    %461 = vmatpush1.msra.mxu0 0.0
    %462 = vmatprep.subr.mxu0 0.0
    %463 = vmatpush1.msra.mxu0 0.0
    %464 = vmatprep.subr.mxu0 0.0
    %465 = vmatpush1.msra.mxu0 0.0
    %466 = vmatprep.subr.mxu0 0.0
    %467 = vmatpush1.msra.mxu0 0.0
    %468 = vmatprep.subr.mxu0 0.0
    %469 = vmatpush1.msra.mxu0 0.0
    %470 = vmatprep.subr.mxu0 0.0
    %471 = vmatpush1.msra.mxu0 0.0
    %472 = vmatprep.subr.mxu0 0.0
    %473 = vmatpush1.msra.mxu0 0.0
    %474 = vmatprep.subr.mxu0 0.0
    %475 = vmatpush1.msra.mxu0 0.0
    %476 = vmatprep.subr.mxu0 0.0
    %477 = vmatpush1.msra.mxu0 0.0
    %478 = vmatprep.subr.mxu0 0.0
    %479 = vmatpush1.msra.mxu0 0.0
    %480 = vmatprep.subr.mxu0 0.0
    %481 = vmatpush1.msra.mxu0 0.0
    %482 = vmatprep.subr.mxu0 0.0
    %483 = vmatpush1.msra.mxu0 0.0
    %484 = vmatprep.subr.mxu0 0.0
    %485 = vmatpush1.msra.mxu0 0.0
    %486 = vmatprep.subr.mxu0 0.0
    %487 = vmatpush1.msra.mxu0 0.0
    %488 = vmatprep.subr.mxu0 0.0
    %489 = vmatpush1.msra.mxu0 %v192
    %490 = vmatprep.subr.mxu0 0.0
    %491 = vmatpush2.msra.mxu0 0.0
    %492 = vmatprep.subr.mxu0 0.0
    %493 = vmatpush2.msra.mxu0 0.0
    %494 = vmatprep.subr.mxu0 0.0
    %495 = vmatpush2.msra.mxu0 0.0
    %496 = vmatprep.subr.mxu0 0.0
    %497 = vmatpush2.msra.mxu0 0.0
    %498 = vmatprep.subr.mxu0 0.0
    %499 = vmatpush2.msra.mxu0 0.0
    %500 = vmatprep.subr.mxu0 0.0
    %501 = vmatpush2.msra.mxu0 0.0
    %502 = vmatprep.subr.mxu0 0.0
    %503 = vmatpush2.msra.mxu0 0.0
    %504 = vmatprep.subr.mxu0 0.0
    %505 = vmatpush2.msra.mxu0 0.0
    %506 = vmatprep.subr.mxu0 0.0
    %507 = vmatpush2.msra.mxu0 0.0
    %508 = vmatprep.subr.mxu0 0.0
    %509 = vmatpush2.msra.mxu0 0.0
    %510 = vmatprep.subr.mxu0 0.0
    %511 = vmatpush2.msra.mxu0 0.0
    %512 = vmatprep.subr.mxu0 0.0
    %513 = vmatpush2.msra.mxu0 0.0
    %514 = vmatprep.subr.mxu0 0.0
    %515 = vmatpush2.msra.mxu0 0.0
    %516 = vmatprep.subr.mxu0 0.0
    %517 = vmatpush2.msra.mxu0 0.0
    %518 = vmatprep.subr.mxu0 0.0
    %519 = vmatpush2.msra.mxu0 0.0
    %520 = vmatprep.subr.mxu0 0.0
    %521 = vmatpush2.msra.mxu0 0.0
    %522 = vmatprep.mubr.f32.mxu0 0.0
    %523 = vmatmul.mubr.f32.gmra.mxu0 %v456
    %v524 = vpop.f32.mrf.mxu0
    %v525 = vadd.f32 0.0, %v524
    %v526 = vpop.f32.mrf.mxu0
    %527 = vdwg.mxu0
    %528 = vrot.lane.b32.xlu0 %v194, 112
    %v529 = vpop.permute.xlu0 %528
    %530 = vrot.lane.b32.xlu0 %v184, 48
    %v531 = vpop.permute.xlu0 %530
    %v532 = vsel %vm199, %v529, 0
    %v534 = vsel %vm199, %v531, 0
    %536 = vmatprep.subr.mxu0 0.0
    %537 = vmatpush1.xpose.msra.mxu0 0.0
    %538 = vmatprep.subr.mxu0 0.0
    %539 = vmatpush1.xpose.msra.mxu0 0.0
    %540 = vmatprep.subr.mxu0 0.0
    %541 = vmatpush1.xpose.msra.mxu0 0.0
    %542 = vmatprep.subr.mxu0 0.0
    %543 = vmatpush1.xpose.msra.mxu0 0.0
    %544 = vmatprep.subr.mxu0 0.0
    %545 = vmatpush1.xpose.msra.mxu0 0.0
    %546 = vmatprep.subr.mxu0 0.0
    %547 = vmatpush1.xpose.msra.mxu0 0.0
    %548 = vmatprep.subr.mxu0 0.0
    %549 = vmatpush1.xpose.msra.mxu0 0.0
    %550 = vmatprep.subr.mxu0 0.0
    %551 = vmatpush1.xpose.msra.mxu0 0.0
    %552 = vmatprep.subr.mxu0 0.0
    %553 = vmatpush1.xpose.msra.mxu0 0.0
    %554 = vmatprep.subr.mxu0 0.0
    %555 = vmatpush1.xpose.msra.mxu0 0.0
    %556 = vmatprep.subr.mxu0 0.0
    %557 = vmatpush1.xpose.msra.mxu0 0.0
    %558 = vmatprep.subr.mxu0 0.0
    %559 = vmatpush1.xpose.msra.mxu0 0.0
    %560 = vmatprep.subr.mxu0 0.0
    %561 = vmatpush1.xpose.msra.mxu0 0.0
    %562 = vmatprep.subr.mxu0 0.0
    %563 = vmatpush1.xpose.msra.mxu0 0.0
    %564 = vmatprep.subr.mxu0 0.0
    %565 = vmatpush1.xpose.msra.mxu0 0.0
    %566 = vmatprep.subr.mxu0 0.0
    %567 = vmatpush1.xpose.msra.mxu0 %v534
    %568 = vmatprep.subr.mxu0 0.0
    %569 = vmatpush2.xpose.msra.mxu0 0.0
    %570 = vmatprep.subr.mxu0 0.0
    %571 = vmatpush2.xpose.msra.mxu0 0.0
    %572 = vmatprep.subr.mxu0 0.0
    %573 = vmatpush2.xpose.msra.mxu0 0.0
    %574 = vmatprep.subr.mxu0 0.0
    %575 = vmatpush2.xpose.msra.mxu0 0.0
    %576 = vmatprep.subr.mxu0 0.0
    %577 = vmatpush2.xpose.msra.mxu0 0.0
    %578 = vmatprep.subr.mxu0 0.0
    %579 = vmatpush2.xpose.msra.mxu0 0.0
    %580 = vmatprep.subr.mxu0 0.0
    %581 = vmatpush2.xpose.msra.mxu0 0.0
    %582 = vmatprep.subr.mxu0 0.0
    %583 = vmatpush2.xpose.msra.mxu0 0.0
    %584 = vmatprep.subr.mxu0 0.0
    %585 = vmatpush2.xpose.msra.mxu0 0.0
    %586 = vmatprep.subr.mxu0 0.0
    %587 = vmatpush2.xpose.msra.mxu0 0.0
    %588 = vmatprep.subr.mxu0 0.0
    %589 = vmatpush2.xpose.msra.mxu0 0.0
    %590 = vmatprep.subr.mxu0 0.0
    %591 = vmatpush2.xpose.msra.mxu0 0.0
    %592 = vmatprep.subr.mxu0 0.0
    %593 = vmatpush2.xpose.msra.mxu0 0.0
    %594 = vmatprep.subr.mxu0 0.0
    %595 = vmatpush2.xpose.msra.mxu0 0.0
    %596 = vmatprep.subr.mxu0 0.0
    %597 = vmatpush2.xpose.msra.mxu0 0.0
    %598 = vmatprep.subr.mxu0 0.0
    %599 = vmatpush2.xpose.msra.mxu0 0.0
    %600 = vmatprep.mubr.f32.mxu0 0.0
    %601 = vmatmul.mubr.f32.gmra.mxu0 %v532
    %v602 = vpop.f32.mrf.mxu0
    %v603 = vadd.f32 0.0, %v602
    %v604 = vpop.f32.mrf.mxu0
    %605 = vdwg.mxu0
    %606 = vrot.lane.b32.xlu0 %v195, 112
    %v607 = vpop.permute.xlu0 %606
    %608 = vrot.lane.b32.xlu0 %v190, 48
    %v609 = vpop.permute.xlu0 %608
    %v610 = vsel %vm199, %v607, 0
    %v612 = vsel %vm199, %v609, 0
    %614 = vmatprep.subr.mxu0 0.0
    %615 = vmatpush1.xpose.msra.mxu0 0.0
    %616 = vmatprep.subr.mxu0 0.0
    %617 = vmatpush1.xpose.msra.mxu0 0.0
    %618 = vmatprep.subr.mxu0 0.0
    %619 = vmatpush1.xpose.msra.mxu0 0.0
    %620 = vmatprep.subr.mxu0 0.0
    %621 = vmatpush1.xpose.msra.mxu0 0.0
    %622 = vmatprep.subr.mxu0 0.0
    %623 = vmatpush1.xpose.msra.mxu0 0.0
    %624 = vmatprep.subr.mxu0 0.0
    %625 = vmatpush1.xpose.msra.mxu0 0.0
    %626 = vmatprep.subr.mxu0 0.0
    %627 = vmatpush1.xpose.msra.mxu0 0.0
    %628 = vmatprep.subr.mxu0 0.0
    %629 = vmatpush1.xpose.msra.mxu0 0.0
    %630 = vmatprep.subr.mxu0 0.0
    %631 = vmatpush1.xpose.msra.mxu0 0.0
    %632 = vmatprep.subr.mxu0 0.0
    %633 = vmatpush1.xpose.msra.mxu0 0.0
    %634 = vmatprep.subr.mxu0 0.0
    %635 = vmatpush1.xpose.msra.mxu0 0.0
    %636 = vmatprep.subr.mxu0 0.0
    %637 = vmatpush1.xpose.msra.mxu0 0.0
    %638 = vmatprep.subr.mxu0 0.0
    %639 = vmatpush1.xpose.msra.mxu0 0.0
    %640 = vmatprep.subr.mxu0 0.0
    %641 = vmatpush1.xpose.msra.mxu0 0.0
    %642 = vmatprep.subr.mxu0 0.0
    %643 = vmatpush1.xpose.msra.mxu0 0.0
    %644 = vmatprep.subr.mxu0 0.0
    %645 = vmatpush1.xpose.msra.mxu0 %v612
    %646 = vmatprep.subr.mxu0 0.0
    %647 = vmatpush2.xpose.msra.mxu0 0.0
    %648 = vmatprep.subr.mxu0 0.0
    %649 = vmatpush2.xpose.msra.mxu0 0.0
    %650 = vmatprep.subr.mxu0 0.0
    %651 = vmatpush2.xpose.msra.mxu0 0.0
    %652 = vmatprep.subr.mxu0 0.0
    %653 = vmatpush2.xpose.msra.mxu0 0.0
    %654 = vmatprep.subr.mxu0 0.0
    %655 = vmatpush2.xpose.msra.mxu0 0.0
    %656 = vmatprep.subr.mxu0 0.0
    %657 = vmatpush2.xpose.msra.mxu0 0.0
    %658 = vmatprep.subr.mxu0 0.0
    %659 = vmatpush2.xpose.msra.mxu0 0.0
    %660 = vmatprep.subr.mxu0 0.0
    %661 = vmatpush2.xpose.msra.mxu0 0.0
    %662 = vmatprep.subr.mxu0 0.0
    %663 = vmatpush2.xpose.msra.mxu0 0.0
    %664 = vmatprep.subr.mxu0 0.0
    %665 = vmatpush2.xpose.msra.mxu0 0.0
    %666 = vmatprep.subr.mxu0 0.0
    %667 = vmatpush2.xpose.msra.mxu0 0.0
    %668 = vmatprep.subr.mxu0 0.0
    %669 = vmatpush2.xpose.msra.mxu0 0.0
    %670 = vmatprep.subr.mxu0 0.0
    %671 = vmatpush2.xpose.msra.mxu0 0.0
    %672 = vmatprep.subr.mxu0 0.0
    %673 = vmatpush2.xpose.msra.mxu0 0.0
    %674 = vmatprep.subr.mxu0 0.0
    %675 = vmatpush2.xpose.msra.mxu0 0.0
    %676 = vmatprep.subr.mxu0 0.0
    %677 = vmatpush2.xpose.msra.mxu0 0.0
    %678 = vmatprep.mubr.f32.mxu0 0.0
    %679 = vmatmul.mubr.f32.gmra.mxu0 %v610
    %v680 = vpop.f32.mrf.mxu0
    %v681 = vadd.f32 0.0, %v680
    %v682 = vpop.f32.mrf.mxu0
    %683 = vdwg.mxu0
    %v684 = vsel %vm353, %v603, -inf
    %685 = vmax.xlane.f32.xlu0 %v684
    %v686 = vpop.xlane.xlu0 %685
    %v687 = vsel %vm353, %v681, -inf
    %688 = vmax.xlane.f32.xlu0 %v687
    %v689 = vpop.xlane.xlu0 %688
    %v690 = vsub.f32 %v603, %v686
    %v691 = vsub.f32 %v681, %v689
    %v692 = vmul.f32 %v690, 1.442695
    %v693 = vpow.pop %v692
    %v694 = vmul.f32 %v691, 1.442695
    %v695 = vpow.pop %v694
    %v696 = vsel %vm353, %v693, 0.0
    %697 = vadd.xlane.f32.xlu0 %v696
    %v698 = vpop.xlane.xlu0 %697
    %v699 = vsel %vm353, %v695, 0.0
    %700 = vadd.xlane.f32.xlu0 %v699
    %v701 = vpop.xlane.xlu0 %700
    %v702 = vrcp.pop %v698
    %v703 = vrcp.pop %v701
    %v704 = vmul.f32 %v698, %v702
    %v705 = vmul.f32 %v701, %v703
    %v706 = vsub.f32 2.0, %v704
    %v707 = vsub.f32 2.0, %v705
    %v708 = vmul.f32 %v702, %v706
    %v709 = vmul.f32 %v703, %v707
    %v710 = vmul.f32 %v693, %v708
    %v711 = vmul.f32 %v695, %v709
    %713 = vrot.lane.b32.xlu0 %v186, 112
    %v714 = vpop.permute.xlu0 %713
    %v717 = vsel %vm353, %v710, 0
    %719 = vmatprep.subr.mxu0 0.0
    %720 = vmatpush1.msra.mxu0 0.0
    %721 = vmatprep.subr.mxu0 0.0
    %722 = vmatpush1.msra.mxu0 0.0
    %723 = vmatprep.subr.mxu0 0.0
    %724 = vmatpush1.msra.mxu0 0.0
    %725 = vmatprep.subr.mxu0 0.0
    %726 = vmatpush1.msra.mxu0 0.0
    %727 = vmatprep.subr.mxu0 0.0
    %728 = vmatpush1.msra.mxu0 0.0
    %729 = vmatprep.subr.mxu0 0.0
    %730 = vmatpush1.msra.mxu0 0.0
    %731 = vmatprep.subr.mxu0 0.0
    %732 = vmatpush1.msra.mxu0 0.0
    %733 = vmatprep.subr.mxu0 0.0
    %734 = vmatpush1.msra.mxu0 0.0
    %735 = vmatprep.subr.mxu0 0.0
    %736 = vmatpush1.msra.mxu0 0.0
    %737 = vmatprep.subr.mxu0 0.0
    %738 = vmatpush1.msra.mxu0 0.0
    %739 = vmatprep.subr.mxu0 0.0
    %740 = vmatpush1.msra.mxu0 0.0
    %741 = vmatprep.subr.mxu0 0.0
    %742 = vmatpush1.msra.mxu0 0.0
    %743 = vmatprep.subr.mxu0 0.0
    %744 = vmatpush1.msra.mxu0 0.0
    %745 = vmatprep.subr.mxu0 0.0
    %746 = vmatpush1.msra.mxu0 0.0
    %747 = vmatprep.subr.mxu0 0.0
    %748 = vmatpush1.msra.mxu0 0.0
    %749 = vmatprep.subr.mxu0 0.0
    %750 = vmatpush1.msra.mxu0 %v714
    %751 = vmatprep.subr.mxu0 0.0
    %752 = vmatpush2.msra.mxu0 0.0
    %753 = vmatprep.subr.mxu0 0.0
    %754 = vmatpush2.msra.mxu0 0.0
    %755 = vmatprep.subr.mxu0 0.0
    %756 = vmatpush2.msra.mxu0 0.0
    %757 = vmatprep.subr.mxu0 0.0
    %758 = vmatpush2.msra.mxu0 0.0
    %759 = vmatprep.subr.mxu0 0.0
    %760 = vmatpush2.msra.mxu0 0.0
    %761 = vmatprep.subr.mxu0 0.0
    %762 = vmatpush2.msra.mxu0 0.0
    %763 = vmatprep.subr.mxu0 0.0
    %764 = vmatpush2.msra.mxu0 0.0
    %765 = vmatprep.subr.mxu0 0.0
    %766 = vmatpush2.msra.mxu0 0.0
    %767 = vmatprep.subr.mxu0 0.0
    %768 = vmatpush2.msra.mxu0 0.0
    %769 = vmatprep.subr.mxu0 0.0
    %770 = vmatpush2.msra.mxu0 0.0
    %771 = vmatprep.subr.mxu0 0.0
    %772 = vmatpush2.msra.mxu0 0.0
    %773 = vmatprep.subr.mxu0 0.0
    %774 = vmatpush2.msra.mxu0 0.0
    %775 = vmatprep.subr.mxu0 0.0
    %776 = vmatpush2.msra.mxu0 0.0
    %777 = vmatprep.subr.mxu0 0.0
    %778 = vmatpush2.msra.mxu0 0.0
    %779 = vmatprep.subr.mxu0 0.0
    %780 = vmatpush2.msra.mxu0 0.0
    %781 = vmatprep.subr.mxu0 0.0
    %782 = vmatpush2.msra.mxu0 0.0
    %783 = vmatprep.mubr.f32.mxu0 0.0
    %784 = vmatmul.mubr.f32.gmra.mxu0 %v717
    %v785 = vpop.f32.mrf.mxu0
    %v786 = vadd.f32 0.0, %v785
    %v787 = vpop.f32.mrf.mxu0
    %788 = vdwg.mxu0
    %790 = vrot.lane.b32.xlu0 %v192, 112
    %v791 = vpop.permute.xlu0 %790
    %v794 = vsel %vm353, %v711, 0
    %796 = vmatprep.subr.mxu0 0.0
    %797 = vmatpush1.msra.mxu0 0.0
    %798 = vmatprep.subr.mxu0 0.0
    %799 = vmatpush1.msra.mxu0 0.0
    %800 = vmatprep.subr.mxu0 0.0
    %801 = vmatpush1.msra.mxu0 0.0
    %802 = vmatprep.subr.mxu0 0.0
    %803 = vmatpush1.msra.mxu0 0.0
    %804 = vmatprep.subr.mxu0 0.0
    %805 = vmatpush1.msra.mxu0 0.0
    %806 = vmatprep.subr.mxu0 0.0
    %807 = vmatpush1.msra.mxu0 0.0
    %808 = vmatprep.subr.mxu0 0.0
    %809 = vmatpush1.msra.mxu0 0.0
    %810 = vmatprep.subr.mxu0 0.0
    %811 = vmatpush1.msra.mxu0 0.0
    %812 = vmatprep.subr.mxu0 0.0
    %813 = vmatpush1.msra.mxu0 0.0
    %814 = vmatprep.subr.mxu0 0.0
    %815 = vmatpush1.msra.mxu0 0.0
    %816 = vmatprep.subr.mxu0 0.0
    %817 = vmatpush1.msra.mxu0 0.0
    %818 = vmatprep.subr.mxu0 0.0
    %819 = vmatpush1.msra.mxu0 0.0
    %820 = vmatprep.subr.mxu0 0.0
    %821 = vmatpush1.msra.mxu0 0.0
    %822 = vmatprep.subr.mxu0 0.0
    %823 = vmatpush1.msra.mxu0 0.0
    %824 = vmatprep.subr.mxu0 0.0
    %825 = vmatpush1.msra.mxu0 0.0
    %826 = vmatprep.subr.mxu0 0.0
    %827 = vmatpush1.msra.mxu0 %v791
    %828 = vmatprep.subr.mxu0 0.0
    %829 = vmatpush2.msra.mxu0 0.0
    %830 = vmatprep.subr.mxu0 0.0
    %831 = vmatpush2.msra.mxu0 0.0
    %832 = vmatprep.subr.mxu0 0.0
    %833 = vmatpush2.msra.mxu0 0.0
    %834 = vmatprep.subr.mxu0 0.0
    %835 = vmatpush2.msra.mxu0 0.0
    %836 = vmatprep.subr.mxu0 0.0
    %837 = vmatpush2.msra.mxu0 0.0
    %838 = vmatprep.subr.mxu0 0.0
    %839 = vmatpush2.msra.mxu0 0.0
    %840 = vmatprep.subr.mxu0 0.0
    %841 = vmatpush2.msra.mxu0 0.0
    %842 = vmatprep.subr.mxu0 0.0
    %843 = vmatpush2.msra.mxu0 0.0
    %844 = vmatprep.subr.mxu0 0.0
    %845 = vmatpush2.msra.mxu0 0.0
    %846 = vmatprep.subr.mxu0 0.0
    %847 = vmatpush2.msra.mxu0 0.0
    %848 = vmatprep.subr.mxu0 0.0
    %849 = vmatpush2.msra.mxu0 0.0
    %850 = vmatprep.subr.mxu0 0.0
    %851 = vmatpush2.msra.mxu0 0.0
    %852 = vmatprep.subr.mxu0 0.0
    %853 = vmatpush2.msra.mxu0 0.0
    %854 = vmatprep.subr.mxu0 0.0
    %855 = vmatpush2.msra.mxu0 0.0
    %856 = vmatprep.subr.mxu0 0.0
    %857 = vmatpush2.msra.mxu0 0.0
    %858 = vmatprep.subr.mxu0 0.0
    %859 = vmatpush2.msra.mxu0 0.0
    %860 = vmatprep.mubr.f32.mxu0 0.0
    %861 = vmatmul.mubr.f32.gmra.mxu0 %v794
    %v862 = vpop.f32.mrf.mxu0
    %v863 = vadd.f32 0.0, %v862
    %v864 = vpop.f32.mrf.mxu0
    %865 = vdwg.mxu0
    %866 = vrot.lane.b32.xlu0 %v194, 96
    %v867 = vpop.permute.xlu0 %866
    %868 = vrot.lane.b32.xlu0 %v184, 32
    %v869 = vpop.permute.xlu0 %868
    %v870 = vsel %vm199, %v867, 0
    %v872 = vsel %vm199, %v869, 0
    %874 = vmatprep.subr.mxu0 0.0
    %875 = vmatpush1.xpose.msra.mxu0 0.0
    %876 = vmatprep.subr.mxu0 0.0
    %877 = vmatpush1.xpose.msra.mxu0 0.0
    %878 = vmatprep.subr.mxu0 0.0
    %879 = vmatpush1.xpose.msra.mxu0 0.0
    %880 = vmatprep.subr.mxu0 0.0
    %881 = vmatpush1.xpose.msra.mxu0 0.0
    %882 = vmatprep.subr.mxu0 0.0
    %883 = vmatpush1.xpose.msra.mxu0 0.0
    %884 = vmatprep.subr.mxu0 0.0
    %885 = vmatpush1.xpose.msra.mxu0 0.0
    %886 = vmatprep.subr.mxu0 0.0
    %887 = vmatpush1.xpose.msra.mxu0 0.0
    %888 = vmatprep.subr.mxu0 0.0
    %889 = vmatpush1.xpose.msra.mxu0 0.0
    %890 = vmatprep.subr.mxu0 0.0
    %891 = vmatpush1.xpose.msra.mxu0 0.0
    %892 = vmatprep.subr.mxu0 0.0
    %893 = vmatpush1.xpose.msra.mxu0 0.0
    %894 = vmatprep.subr.mxu0 0.0
    %895 = vmatpush1.xpose.msra.mxu0 0.0
    %896 = vmatprep.subr.mxu0 0.0
    %897 = vmatpush1.xpose.msra.mxu0 0.0
    %898 = vmatprep.subr.mxu0 0.0
    %899 = vmatpush1.xpose.msra.mxu0 0.0
    %900 = vmatprep.subr.mxu0 0.0
    %901 = vmatpush1.xpose.msra.mxu0 0.0
    %902 = vmatprep.subr.mxu0 0.0
    %903 = vmatpush1.xpose.msra.mxu0 0.0
    %904 = vmatprep.subr.mxu0 0.0
    %905 = vmatpush1.xpose.msra.mxu0 %v872
    %906 = vmatprep.subr.mxu0 0.0
    %907 = vmatpush2.xpose.msra.mxu0 0.0
    %908 = vmatprep.subr.mxu0 0.0
    %909 = vmatpush2.xpose.msra.mxu0 0.0
    %910 = vmatprep.subr.mxu0 0.0
    %911 = vmatpush2.xpose.msra.mxu0 0.0
    %912 = vmatprep.subr.mxu0 0.0
    %913 = vmatpush2.xpose.msra.mxu0 0.0
    %914 = vmatprep.subr.mxu0 0.0
    %915 = vmatpush2.xpose.msra.mxu0 0.0
    %916 = vmatprep.subr.mxu0 0.0
    %917 = vmatpush2.xpose.msra.mxu0 0.0
    %918 = vmatprep.subr.mxu0 0.0
    %919 = vmatpush2.xpose.msra.mxu0 0.0
    %920 = vmatprep.subr.mxu0 0.0
    %921 = vmatpush2.xpose.msra.mxu0 0.0
    %922 = vmatprep.subr.mxu0 0.0
    %923 = vmatpush2.xpose.msra.mxu0 0.0
    %924 = vmatprep.subr.mxu0 0.0
    %925 = vmatpush2.xpose.msra.mxu0 0.0
    %926 = vmatprep.subr.mxu0 0.0
    %927 = vmatpush2.xpose.msra.mxu0 0.0
    %928 = vmatprep.subr.mxu0 0.0
    %929 = vmatpush2.xpose.msra.mxu0 0.0
    %930 = vmatprep.subr.mxu0 0.0
    %931 = vmatpush2.xpose.msra.mxu0 0.0
    %932 = vmatprep.subr.mxu0 0.0
    %933 = vmatpush2.xpose.msra.mxu0 0.0
    %934 = vmatprep.subr.mxu0 0.0
    %935 = vmatpush2.xpose.msra.mxu0 0.0
    %936 = vmatprep.subr.mxu0 0.0
    %937 = vmatpush2.xpose.msra.mxu0 0.0
    %938 = vmatprep.mubr.f32.mxu0 0.0
    %939 = vmatmul.mubr.f32.gmra.mxu0 %v870
    %v940 = vpop.f32.mrf.mxu0
    %v941 = vadd.f32 0.0, %v940
    %v942 = vpop.f32.mrf.mxu0
    %943 = vdwg.mxu0
    %944 = vrot.lane.b32.xlu0 %v195, 96
    %v945 = vpop.permute.xlu0 %944
    %946 = vrot.lane.b32.xlu0 %v190, 32
    %v947 = vpop.permute.xlu0 %946
    %v948 = vsel %vm199, %v945, 0
    %v950 = vsel %vm199, %v947, 0
    %952 = vmatprep.subr.mxu0 0.0
    %953 = vmatpush1.xpose.msra.mxu0 0.0
    %954 = vmatprep.subr.mxu0 0.0
    %955 = vmatpush1.xpose.msra.mxu0 0.0
    %956 = vmatprep.subr.mxu0 0.0
    %957 = vmatpush1.xpose.msra.mxu0 0.0
    %958 = vmatprep.subr.mxu0 0.0
    %959 = vmatpush1.xpose.msra.mxu0 0.0
    %960 = vmatprep.subr.mxu0 0.0
    %961 = vmatpush1.xpose.msra.mxu0 0.0
    %962 = vmatprep.subr.mxu0 0.0
    %963 = vmatpush1.xpose.msra.mxu0 0.0
    %964 = vmatprep.subr.mxu0 0.0
    %965 = vmatpush1.xpose.msra.mxu0 0.0
    %966 = vmatprep.subr.mxu0 0.0
    %967 = vmatpush1.xpose.msra.mxu0 0.0
    %968 = vmatprep.subr.mxu0 0.0
    %969 = vmatpush1.xpose.msra.mxu0 0.0
    %970 = vmatprep.subr.mxu0 0.0
    %971 = vmatpush1.xpose.msra.mxu0 0.0
    %972 = vmatprep.subr.mxu0 0.0
    %973 = vmatpush1.xpose.msra.mxu0 0.0
    %974 = vmatprep.subr.mxu0 0.0
    %975 = vmatpush1.xpose.msra.mxu0 0.0
    %976 = vmatprep.subr.mxu0 0.0
    %977 = vmatpush1.xpose.msra.mxu0 0.0
    %978 = vmatprep.subr.mxu0 0.0
    %979 = vmatpush1.xpose.msra.mxu0 0.0
    %980 = vmatprep.subr.mxu0 0.0
    %981 = vmatpush1.xpose.msra.mxu0 0.0
    %982 = vmatprep.subr.mxu0 0.0
    %983 = vmatpush1.xpose.msra.mxu0 %v950
    %984 = vmatprep.subr.mxu0 0.0
    %985 = vmatpush2.xpose.msra.mxu0 0.0
    %986 = vmatprep.subr.mxu0 0.0
    %987 = vmatpush2.xpose.msra.mxu0 0.0
    %988 = vmatprep.subr.mxu0 0.0
    %989 = vmatpush2.xpose.msra.mxu0 0.0
    %990 = vmatprep.subr.mxu0 0.0
    %991 = vmatpush2.xpose.msra.mxu0 0.0
    %992 = vmatprep.subr.mxu0 0.0
    %993 = vmatpush2.xpose.msra.mxu0 0.0
    %994 = vmatprep.subr.mxu0 0.0
    %995 = vmatpush2.xpose.msra.mxu0 0.0
    %996 = vmatprep.subr.mxu0 0.0
    %997 = vmatpush2.xpose.msra.mxu0 0.0
    %998 = vmatprep.subr.mxu0 0.0
    %999 = vmatpush2.xpose.msra.mxu0 0.0
    %1000 = vmatprep.subr.mxu0 0.0
    %1001 = vmatpush2.xpose.msra.mxu0 0.0
    %1002 = vmatprep.subr.mxu0 0.0
    %1003 = vmatpush2.xpose.msra.mxu0 0.0
    %1004 = vmatprep.subr.mxu0 0.0
    %1005 = vmatpush2.xpose.msra.mxu0 0.0
    %1006 = vmatprep.subr.mxu0 0.0
    %1007 = vmatpush2.xpose.msra.mxu0 0.0
    %1008 = vmatprep.subr.mxu0 0.0
    %1009 = vmatpush2.xpose.msra.mxu0 0.0
    %1010 = vmatprep.subr.mxu0 0.0
    %1011 = vmatpush2.xpose.msra.mxu0 0.0
    %1012 = vmatprep.subr.mxu0 0.0
    %1013 = vmatpush2.xpose.msra.mxu0 0.0
    %1014 = vmatprep.subr.mxu0 0.0
    %1015 = vmatpush2.xpose.msra.mxu0 0.0
    %1016 = vmatprep.mubr.f32.mxu0 0.0
    %1017 = vmatmul.mubr.f32.gmra.mxu0 %v948
    %v1018 = vpop.f32.mrf.mxu0
    %v1019 = vadd.f32 0.0, %v1018
    %v1020 = vpop.f32.mrf.mxu0
    %1021 = vdwg.mxu0
    %v1022 = vsel %vm353, %v941, -inf
    %1023 = vmax.xlane.f32.xlu0 %v1022
    %v1024 = vpop.xlane.xlu0 %1023
    %v1025 = vsel %vm353, %v1019, -inf
    %1026 = vmax.xlane.f32.xlu0 %v1025
    %v1027 = vpop.xlane.xlu0 %1026
    %v1028 = vsub.f32 %v941, %v1024
    %v1029 = vsub.f32 %v1019, %v1027
    %v1030 = vmul.f32 %v1028, 1.442695
    %v1031 = vpow.pop %v1030
    %v1032 = vmul.f32 %v1029, 1.442695
    %v1033 = vpow.pop %v1032
    %v1034 = vsel %vm353, %v1031, 0.0
    %1035 = vadd.xlane.f32.xlu0 %v1034
    %v1036 = vpop.xlane.xlu0 %1035
    %v1037 = vsel %vm353, %v1033, 0.0
    %1038 = vadd.xlane.f32.xlu0 %v1037
    %v1039 = vpop.xlane.xlu0 %1038
    %v1040 = vrcp.pop %v1036
    %v1041 = vrcp.pop %v1039
    %v1042 = vmul.f32 %v1036, %v1040
    %v1043 = vmul.f32 %v1039, %v1041
    %v1044 = vsub.f32 2.0, %v1042
    %v1045 = vsub.f32 2.0, %v1043
    %v1046 = vmul.f32 %v1040, %v1044
    %v1047 = vmul.f32 %v1041, %v1045
    %v1048 = vmul.f32 %v1031, %v1046
    %v1049 = vmul.f32 %v1033, %v1047
    %1050 = vrot.lane.b32.xlu0 %v186, 96
    %v1051 = vpop.permute.xlu0 %1050
    %v1054 = vsel %vm353, %v1048, 0
    %1056 = vmatprep.subr.mxu0 0.0
    %1057 = vmatpush1.msra.mxu0 0.0
    %1058 = vmatprep.subr.mxu0 0.0
    %1059 = vmatpush1.msra.mxu0 0.0
    %1060 = vmatprep.subr.mxu0 0.0
    %1061 = vmatpush1.msra.mxu0 0.0
    %1062 = vmatprep.subr.mxu0 0.0
    %1063 = vmatpush1.msra.mxu0 0.0
    %1064 = vmatprep.subr.mxu0 0.0
    %1065 = vmatpush1.msra.mxu0 0.0
    %1066 = vmatprep.subr.mxu0 0.0
    %1067 = vmatpush1.msra.mxu0 0.0
    %1068 = vmatprep.subr.mxu0 0.0
    %1069 = vmatpush1.msra.mxu0 0.0
    %1070 = vmatprep.subr.mxu0 0.0
    %1071 = vmatpush1.msra.mxu0 0.0
    %1072 = vmatprep.subr.mxu0 0.0
    %1073 = vmatpush1.msra.mxu0 0.0
    %1074 = vmatprep.subr.mxu0 0.0
    %1075 = vmatpush1.msra.mxu0 0.0
    %1076 = vmatprep.subr.mxu0 0.0
    %1077 = vmatpush1.msra.mxu0 0.0
    %1078 = vmatprep.subr.mxu0 0.0
    %1079 = vmatpush1.msra.mxu0 0.0
    %1080 = vmatprep.subr.mxu0 0.0
    %1081 = vmatpush1.msra.mxu0 0.0
    %1082 = vmatprep.subr.mxu0 0.0
    %1083 = vmatpush1.msra.mxu0 0.0
    %1084 = vmatprep.subr.mxu0 0.0
    %1085 = vmatpush1.msra.mxu0 0.0
    %1086 = vmatprep.subr.mxu0 0.0
    %1087 = vmatpush1.msra.mxu0 %v1051
    %1088 = vmatprep.subr.mxu0 0.0
    %1089 = vmatpush2.msra.mxu0 0.0
    %1090 = vmatprep.subr.mxu0 0.0
    %1091 = vmatpush2.msra.mxu0 0.0
    %1092 = vmatprep.subr.mxu0 0.0
    %1093 = vmatpush2.msra.mxu0 0.0
    %1094 = vmatprep.subr.mxu0 0.0
    %1095 = vmatpush2.msra.mxu0 0.0
    %1096 = vmatprep.subr.mxu0 0.0
    %1097 = vmatpush2.msra.mxu0 0.0
    %1098 = vmatprep.subr.mxu0 0.0
    %1099 = vmatpush2.msra.mxu0 0.0
    %1100 = vmatprep.subr.mxu0 0.0
    %1101 = vmatpush2.msra.mxu0 0.0
    %1102 = vmatprep.subr.mxu0 0.0
    %1103 = vmatpush2.msra.mxu0 0.0
    %1104 = vmatprep.subr.mxu0 0.0
    %1105 = vmatpush2.msra.mxu0 0.0
    %1106 = vmatprep.subr.mxu0 0.0
    %1107 = vmatpush2.msra.mxu0 0.0
    %1108 = vmatprep.subr.mxu0 0.0
    %1109 = vmatpush2.msra.mxu0 0.0
    %1110 = vmatprep.subr.mxu0 0.0
    %1111 = vmatpush2.msra.mxu0 0.0
    %1112 = vmatprep.subr.mxu0 0.0
    %1113 = vmatpush2.msra.mxu0 0.0
    %1114 = vmatprep.subr.mxu0 0.0
    %1115 = vmatpush2.msra.mxu0 0.0
    %1116 = vmatprep.subr.mxu0 0.0
    %1117 = vmatpush2.msra.mxu0 0.0
    %1118 = vmatprep.subr.mxu0 0.0
    %1119 = vmatpush2.msra.mxu0 0.0
    %1120 = vmatprep.mubr.f32.mxu0 0.0
    %1121 = vmatmul.mubr.f32.gmra.mxu0 %v1054
    %v1122 = vpop.f32.mrf.mxu0
    %v1123 = vadd.f32 0.0, %v1122
    %v1124 = vpop.f32.mrf.mxu0
    %1125 = vdwg.mxu0
    %1126 = vrot.lane.b32.xlu0 %v192, 96
    %v1127 = vpop.permute.xlu0 %1126
    %v1130 = vsel %vm353, %v1049, 0
    %1132 = vmatprep.subr.mxu0 0.0
    %1133 = vmatpush1.msra.mxu0 0.0
    %1134 = vmatprep.subr.mxu0 0.0
    %1135 = vmatpush1.msra.mxu0 0.0
    %1136 = vmatprep.subr.mxu0 0.0
    %1137 = vmatpush1.msra.mxu0 0.0
    %1138 = vmatprep.subr.mxu0 0.0
    %1139 = vmatpush1.msra.mxu0 0.0
    %1140 = vmatprep.subr.mxu0 0.0
    %1141 = vmatpush1.msra.mxu0 0.0
    %1142 = vmatprep.subr.mxu0 0.0
    %1143 = vmatpush1.msra.mxu0 0.0
    %1144 = vmatprep.subr.mxu0 0.0
    %1145 = vmatpush1.msra.mxu0 0.0
    %1146 = vmatprep.subr.mxu0 0.0
    %1147 = vmatpush1.msra.mxu0 0.0
    %1148 = vmatprep.subr.mxu0 0.0
    %1149 = vmatpush1.msra.mxu0 0.0
    %1150 = vmatprep.subr.mxu0 0.0
    %1151 = vmatpush1.msra.mxu0 0.0
    %1152 = vmatprep.subr.mxu0 0.0
    %1153 = vmatpush1.msra.mxu0 0.0
    %1154 = vmatprep.subr.mxu0 0.0
    %1155 = vmatpush1.msra.mxu0 0.0
    %1156 = vmatprep.subr.mxu0 0.0
    %1157 = vmatpush1.msra.mxu0 0.0
    %1158 = vmatprep.subr.mxu0 0.0
    %1159 = vmatpush1.msra.mxu0 0.0
    %1160 = vmatprep.subr.mxu0 0.0
    %1161 = vmatpush1.msra.mxu0 0.0
    %1162 = vmatprep.subr.mxu0 0.0
    %1163 = vmatpush1.msra.mxu0 %v1127
    %1164 = vmatprep.subr.mxu0 0.0
    %1165 = vmatpush2.msra.mxu0 0.0
    %1166 = vmatprep.subr.mxu0 0.0
    %1167 = vmatpush2.msra.mxu0 0.0
    %1168 = vmatprep.subr.mxu0 0.0
    %1169 = vmatpush2.msra.mxu0 0.0
    %1170 = vmatprep.subr.mxu0 0.0
    %1171 = vmatpush2.msra.mxu0 0.0
    %1172 = vmatprep.subr.mxu0 0.0
    %1173 = vmatpush2.msra.mxu0 0.0
    %1174 = vmatprep.subr.mxu0 0.0
    %1175 = vmatpush2.msra.mxu0 0.0
    %1176 = vmatprep.subr.mxu0 0.0
    %1177 = vmatpush2.msra.mxu0 0.0
    %1178 = vmatprep.subr.mxu0 0.0
    %1179 = vmatpush2.msra.mxu0 0.0
    %1180 = vmatprep.subr.mxu0 0.0
    %1181 = vmatpush2.msra.mxu0 0.0
    %1182 = vmatprep.subr.mxu0 0.0
    %1183 = vmatpush2.msra.mxu0 0.0
    %1184 = vmatprep.subr.mxu0 0.0
    %1185 = vmatpush2.msra.mxu0 0.0
    %1186 = vmatprep.subr.mxu0 0.0
    %1187 = vmatpush2.msra.mxu0 0.0
    %1188 = vmatprep.subr.mxu0 0.0
    %1189 = vmatpush2.msra.mxu0 0.0
    %1190 = vmatprep.subr.mxu0 0.0
    %1191 = vmatpush2.msra.mxu0 0.0
    %1192 = vmatprep.subr.mxu0 0.0
    %1193 = vmatpush2.msra.mxu0 0.0
    %1194 = vmatprep.subr.mxu0 0.0
    %1195 = vmatpush2.msra.mxu0 0.0
    %1196 = vmatprep.mubr.f32.mxu0 0.0
    %1197 = vmatmul.mubr.f32.gmra.mxu0 %v1130
    %v1198 = vpop.f32.mrf.mxu0
    %v1199 = vadd.f32 0.0, %v1198
    %v1200 = vpop.f32.mrf.mxu0
    %1201 = vdwg.mxu0
    %1202 = vrot.lane.b32.xlu0 %v194, 80
    %v1203 = vpop.permute.xlu0 %1202
    %1204 = vrot.lane.b32.xlu0 %v184, 16
    %v1205 = vpop.permute.xlu0 %1204
    %v1206 = vsel %vm199, %v1203, 0
    %v1208 = vsel %vm199, %v1205, 0
    %1210 = vmatprep.subr.mxu0 0.0
    %1211 = vmatpush1.xpose.msra.mxu0 0.0
    %1212 = vmatprep.subr.mxu0 0.0
    %1213 = vmatpush1.xpose.msra.mxu0 0.0
    %1214 = vmatprep.subr.mxu0 0.0
    %1215 = vmatpush1.xpose.msra.mxu0 0.0
    %1216 = vmatprep.subr.mxu0 0.0
    %1217 = vmatpush1.xpose.msra.mxu0 0.0
    %1218 = vmatprep.subr.mxu0 0.0
    %1219 = vmatpush1.xpose.msra.mxu0 0.0
    %1220 = vmatprep.subr.mxu0 0.0
    %1221 = vmatpush1.xpose.msra.mxu0 0.0
    %1222 = vmatprep.subr.mxu0 0.0
    %1223 = vmatpush1.xpose.msra.mxu0 0.0
    %1224 = vmatprep.subr.mxu0 0.0
    %1225 = vmatpush1.xpose.msra.mxu0 0.0
    %1226 = vmatprep.subr.mxu0 0.0
    %1227 = vmatpush1.xpose.msra.mxu0 0.0
    %1228 = vmatprep.subr.mxu0 0.0
    %1229 = vmatpush1.xpose.msra.mxu0 0.0
    %1230 = vmatprep.subr.mxu0 0.0
    %1231 = vmatpush1.xpose.msra.mxu0 0.0
    %1232 = vmatprep.subr.mxu0 0.0
    %1233 = vmatpush1.xpose.msra.mxu0 0.0
    %1234 = vmatprep.subr.mxu0 0.0
    %1235 = vmatpush1.xpose.msra.mxu0 0.0
    %1236 = vmatprep.subr.mxu0 0.0
    %1237 = vmatpush1.xpose.msra.mxu0 0.0
    %1238 = vmatprep.subr.mxu0 0.0
    %1239 = vmatpush1.xpose.msra.mxu0 0.0
    %1240 = vmatprep.subr.mxu0 0.0
    %1241 = vmatpush1.xpose.msra.mxu0 %v1208
    %1242 = vmatprep.subr.mxu0 0.0
    %1243 = vmatpush2.xpose.msra.mxu0 0.0
    %1244 = vmatprep.subr.mxu0 0.0
    %1245 = vmatpush2.xpose.msra.mxu0 0.0
    %1246 = vmatprep.subr.mxu0 0.0
    %1247 = vmatpush2.xpose.msra.mxu0 0.0
    %1248 = vmatprep.subr.mxu0 0.0
    %1249 = vmatpush2.xpose.msra.mxu0 0.0
    %1250 = vmatprep.subr.mxu0 0.0
    %1251 = vmatpush2.xpose.msra.mxu0 0.0
    %1252 = vmatprep.subr.mxu0 0.0
    %1253 = vmatpush2.xpose.msra.mxu0 0.0
    %1254 = vmatprep.subr.mxu0 0.0
    %1255 = vmatpush2.xpose.msra.mxu0 0.0
    %1256 = vmatprep.subr.mxu0 0.0
    %1257 = vmatpush2.xpose.msra.mxu0 0.0
    %1258 = vmatprep.subr.mxu0 0.0
    %1259 = vmatpush2.xpose.msra.mxu0 0.0
    %1260 = vmatprep.subr.mxu0 0.0
    %1261 = vmatpush2.xpose.msra.mxu0 0.0
    %1262 = vmatprep.subr.mxu0 0.0
    %1263 = vmatpush2.xpose.msra.mxu0 0.0
    %1264 = vmatprep.subr.mxu0 0.0
    %1265 = vmatpush2.xpose.msra.mxu0 0.0
    %1266 = vmatprep.subr.mxu0 0.0
    %1267 = vmatpush2.xpose.msra.mxu0 0.0
    %1268 = vmatprep.subr.mxu0 0.0
    %1269 = vmatpush2.xpose.msra.mxu0 0.0
    %1270 = vmatprep.subr.mxu0 0.0
    %1271 = vmatpush2.xpose.msra.mxu0 0.0
    %1272 = vmatprep.subr.mxu0 0.0
    %1273 = vmatpush2.xpose.msra.mxu0 0.0
    %1274 = vmatprep.mubr.f32.mxu0 0.0
    %1275 = vmatmul.mubr.f32.gmra.mxu0 %v1206
    %v1276 = vpop.f32.mrf.mxu0
    %v1277 = vadd.f32 0.0, %v1276
    %v1278 = vpop.f32.mrf.mxu0
    %1279 = vdwg.mxu0
    %1280 = vrot.lane.b32.xlu0 %v195, 80
    %v1281 = vpop.permute.xlu0 %1280
    %1282 = vrot.lane.b32.xlu0 %v190, 16
    %v1283 = vpop.permute.xlu0 %1282
    %v1284 = vsel %vm199, %v1281, 0
    %v1286 = vsel %vm199, %v1283, 0
    %1288 = vmatprep.subr.mxu0 0.0
    %1289 = vmatpush1.xpose.msra.mxu0 0.0
    %1290 = vmatprep.subr.mxu0 0.0
    %1291 = vmatpush1.xpose.msra.mxu0 0.0
    %1292 = vmatprep.subr.mxu0 0.0
    %1293 = vmatpush1.xpose.msra.mxu0 0.0
    %1294 = vmatprep.subr.mxu0 0.0
    %1295 = vmatpush1.xpose.msra.mxu0 0.0
    %1296 = vmatprep.subr.mxu0 0.0
    %1297 = vmatpush1.xpose.msra.mxu0 0.0
    %1298 = vmatprep.subr.mxu0 0.0
    %1299 = vmatpush1.xpose.msra.mxu0 0.0
    %1300 = vmatprep.subr.mxu0 0.0
    %1301 = vmatpush1.xpose.msra.mxu0 0.0
    %1302 = vmatprep.subr.mxu0 0.0
    %1303 = vmatpush1.xpose.msra.mxu0 0.0
    %1304 = vmatprep.subr.mxu0 0.0
    %1305 = vmatpush1.xpose.msra.mxu0 0.0
    %1306 = vmatprep.subr.mxu0 0.0
    %1307 = vmatpush1.xpose.msra.mxu0 0.0
    %1308 = vmatprep.subr.mxu0 0.0
    %1309 = vmatpush1.xpose.msra.mxu0 0.0
    %1310 = vmatprep.subr.mxu0 0.0
    %1311 = vmatpush1.xpose.msra.mxu0 0.0
    %1312 = vmatprep.subr.mxu0 0.0
    %1313 = vmatpush1.xpose.msra.mxu0 0.0
    %1314 = vmatprep.subr.mxu0 0.0
    %1315 = vmatpush1.xpose.msra.mxu0 0.0
    %1316 = vmatprep.subr.mxu0 0.0
    %1317 = vmatpush1.xpose.msra.mxu0 0.0
    %1318 = vmatprep.subr.mxu0 0.0
    %1319 = vmatpush1.xpose.msra.mxu0 %v1286
    %1320 = vmatprep.subr.mxu0 0.0
    %1321 = vmatpush2.xpose.msra.mxu0 0.0
    %1322 = vmatprep.subr.mxu0 0.0
    %1323 = vmatpush2.xpose.msra.mxu0 0.0
    %1324 = vmatprep.subr.mxu0 0.0
    %1325 = vmatpush2.xpose.msra.mxu0 0.0
    %1326 = vmatprep.subr.mxu0 0.0
    %1327 = vmatpush2.xpose.msra.mxu0 0.0
    %1328 = vmatprep.subr.mxu0 0.0
    %1329 = vmatpush2.xpose.msra.mxu0 0.0
    %1330 = vmatprep.subr.mxu0 0.0
    %1331 = vmatpush2.xpose.msra.mxu0 0.0
    %1332 = vmatprep.subr.mxu0 0.0
    %1333 = vmatpush2.xpose.msra.mxu0 0.0
    %1334 = vmatprep.subr.mxu0 0.0
    %1335 = vmatpush2.xpose.msra.mxu0 0.0
    %1336 = vmatprep.subr.mxu0 0.0
    %1337 = vmatpush2.xpose.msra.mxu0 0.0
    %1338 = vmatprep.subr.mxu0 0.0
    %1339 = vmatpush2.xpose.msra.mxu0 0.0
    %1340 = vmatprep.subr.mxu0 0.0
    %1341 = vmatpush2.xpose.msra.mxu0 0.0
    %1342 = vmatprep.subr.mxu0 0.0
    %1343 = vmatpush2.xpose.msra.mxu0 0.0
    %1344 = vmatprep.subr.mxu0 0.0
    %1345 = vmatpush2.xpose.msra.mxu0 0.0
    %1346 = vmatprep.subr.mxu0 0.0
    %1347 = vmatpush2.xpose.msra.mxu0 0.0
    %1348 = vmatprep.subr.mxu0 0.0
    %1349 = vmatpush2.xpose.msra.mxu0 0.0
    %1350 = vmatprep.subr.mxu0 0.0
    %1351 = vmatpush2.xpose.msra.mxu0 0.0
    %1352 = vmatprep.mubr.f32.mxu0 0.0
    %1353 = vmatmul.mubr.f32.gmra.mxu0 %v1284
    %v1354 = vpop.f32.mrf.mxu0
    %v1355 = vadd.f32 0.0, %v1354
    %v1356 = vpop.f32.mrf.mxu0
    %1357 = vdwg.mxu0
    %v1358 = vsel %vm353, %v1277, -inf
    %1359 = vmax.xlane.f32.xlu0 %v1358
    %v1360 = vpop.xlane.xlu0 %1359
    %v1361 = vsel %vm353, %v1355, -inf
    %1362 = vmax.xlane.f32.xlu0 %v1361
    %v1363 = vpop.xlane.xlu0 %1362
    %v1364 = vsub.f32 %v1277, %v1360
    %v1365 = vsub.f32 %v1355, %v1363
    %v1366 = vmul.f32 %v1364, 1.442695
    %v1367 = vpow.pop %v1366
    %v1368 = vmul.f32 %v1365, 1.442695
    %v1369 = vpow.pop %v1368
    %v1370 = vsel %vm353, %v1367, 0.0
    %1371 = vadd.xlane.f32.xlu0 %v1370
    %v1372 = vpop.xlane.xlu0 %1371
    %v1373 = vsel %vm353, %v1369, 0.0
    %1374 = vadd.xlane.f32.xlu0 %v1373
    %v1375 = vpop.xlane.xlu0 %1374
    %v1376 = vrcp.pop %v1372
    %v1377 = vrcp.pop %v1375
    %v1378 = vmul.f32 %v1372, %v1376
    %v1379 = vmul.f32 %v1375, %v1377
    %v1380 = vsub.f32 2.0, %v1378
    %v1381 = vsub.f32 2.0, %v1379
    %v1382 = vmul.f32 %v1376, %v1380
    %v1383 = vmul.f32 %v1377, %v1381
    %v1384 = vmul.f32 %v1367, %v1382
    %v1385 = vmul.f32 %v1369, %v1383
    %1386 = vrot.lane.b32.xlu0 %v186, 80
    %v1387 = vpop.permute.xlu0 %1386
    %v1390 = vsel %vm353, %v1384, 0
    %1392 = vmatprep.subr.mxu0 0.0
    %1393 = vmatpush1.msra.mxu0 0.0
    %1394 = vmatprep.subr.mxu0 0.0
    %1395 = vmatpush1.msra.mxu0 0.0
    %1396 = vmatprep.subr.mxu0 0.0
    %1397 = vmatpush1.msra.mxu0 0.0
    %1398 = vmatprep.subr.mxu0 0.0
    %1399 = vmatpush1.msra.mxu0 0.0
    %1400 = vmatprep.subr.mxu0 0.0
    %1401 = vmatpush1.msra.mxu0 0.0
    %1402 = vmatprep.subr.mxu0 0.0
    %1403 = vmatpush1.msra.mxu0 0.0
    %1404 = vmatprep.subr.mxu0 0.0
    %1405 = vmatpush1.msra.mxu0 0.0
    %1406 = vmatprep.subr.mxu0 0.0
    %1407 = vmatpush1.msra.mxu0 0.0
    %1408 = vmatprep.subr.mxu0 0.0
    %1409 = vmatpush1.msra.mxu0 0.0
    %1410 = vmatprep.subr.mxu0 0.0
    %1411 = vmatpush1.msra.mxu0 0.0
    %1412 = vmatprep.subr.mxu0 0.0
    %1413 = vmatpush1.msra.mxu0 0.0
    %1414 = vmatprep.subr.mxu0 0.0
    %1415 = vmatpush1.msra.mxu0 0.0
    %1416 = vmatprep.subr.mxu0 0.0
    %1417 = vmatpush1.msra.mxu0 0.0
    %1418 = vmatprep.subr.mxu0 0.0
    %1419 = vmatpush1.msra.mxu0 0.0
    %1420 = vmatprep.subr.mxu0 0.0
    %1421 = vmatpush1.msra.mxu0 0.0
    %1422 = vmatprep.subr.mxu0 0.0
    %1423 = vmatpush1.msra.mxu0 %v1387
    %1424 = vmatprep.subr.mxu0 0.0
    %1425 = vmatpush2.msra.mxu0 0.0
    %1426 = vmatprep.subr.mxu0 0.0
    %1427 = vmatpush2.msra.mxu0 0.0
    %1428 = vmatprep.subr.mxu0 0.0
    %1429 = vmatpush2.msra.mxu0 0.0
    %1430 = vmatprep.subr.mxu0 0.0
    %1431 = vmatpush2.msra.mxu0 0.0
    %1432 = vmatprep.subr.mxu0 0.0
    %1433 = vmatpush2.msra.mxu0 0.0
    %1434 = vmatprep.subr.mxu0 0.0
    %1435 = vmatpush2.msra.mxu0 0.0
    %1436 = vmatprep.subr.mxu0 0.0
    %1437 = vmatpush2.msra.mxu0 0.0
    %1438 = vmatprep.subr.mxu0 0.0
    %1439 = vmatpush2.msra.mxu0 0.0
    %1440 = vmatprep.subr.mxu0 0.0
    %1441 = vmatpush2.msra.mxu0 0.0
    %1442 = vmatprep.subr.mxu0 0.0
    %1443 = vmatpush2.msra.mxu0 0.0
    %1444 = vmatprep.subr.mxu0 0.0
    %1445 = vmatpush2.msra.mxu0 0.0
    %1446 = vmatprep.subr.mxu0 0.0
    %1447 = vmatpush2.msra.mxu0 0.0
    %1448 = vmatprep.subr.mxu0 0.0
    %1449 = vmatpush2.msra.mxu0 0.0
    %1450 = vmatprep.subr.mxu0 0.0
    %1451 = vmatpush2.msra.mxu0 0.0
    %1452 = vmatprep.subr.mxu0 0.0
    %1453 = vmatpush2.msra.mxu0 0.0
    %1454 = vmatprep.subr.mxu0 0.0
    %1455 = vmatpush2.msra.mxu0 0.0
    %1456 = vmatprep.mubr.f32.mxu0 0.0
    %1457 = vmatmul.mubr.f32.gmra.mxu0 %v1390
    %v1458 = vpop.f32.mrf.mxu0
    %v1459 = vadd.f32 0.0, %v1458
    %v1460 = vpop.f32.mrf.mxu0
    %1461 = vdwg.mxu0
    %1462 = vrot.lane.b32.xlu0 %v192, 80
    %v1463 = vpop.permute.xlu0 %1462
    %v1466 = vsel %vm353, %v1385, 0
    %1468 = vmatprep.subr.mxu0 0.0
    %1469 = vmatpush1.msra.mxu0 0.0
    %1470 = vmatprep.subr.mxu0 0.0
    %1471 = vmatpush1.msra.mxu0 0.0
    %1472 = vmatprep.subr.mxu0 0.0
    %1473 = vmatpush1.msra.mxu0 0.0
    %1474 = vmatprep.subr.mxu0 0.0
    %1475 = vmatpush1.msra.mxu0 0.0
    %1476 = vmatprep.subr.mxu0 0.0
    %1477 = vmatpush1.msra.mxu0 0.0
    %1478 = vmatprep.subr.mxu0 0.0
    %1479 = vmatpush1.msra.mxu0 0.0
    %1480 = vmatprep.subr.mxu0 0.0
    %1481 = vmatpush1.msra.mxu0 0.0
    %1482 = vmatprep.subr.mxu0 0.0
    %1483 = vmatpush1.msra.mxu0 0.0
    %1484 = vmatprep.subr.mxu0 0.0
    %1485 = vmatpush1.msra.mxu0 0.0
    %1486 = vmatprep.subr.mxu0 0.0
    %1487 = vmatpush1.msra.mxu0 0.0
    %1488 = vmatprep.subr.mxu0 0.0
    %1489 = vmatpush1.msra.mxu0 0.0
    %1490 = vmatprep.subr.mxu0 0.0
    %1491 = vmatpush1.msra.mxu0 0.0
    %1492 = vmatprep.subr.mxu0 0.0
    %1493 = vmatpush1.msra.mxu0 0.0
    %1494 = vmatprep.subr.mxu0 0.0
    %1495 = vmatpush1.msra.mxu0 0.0
    %1496 = vmatprep.subr.mxu0 0.0
    %1497 = vmatpush1.msra.mxu0 0.0
    %1498 = vmatprep.subr.mxu0 0.0
    %1499 = vmatpush1.msra.mxu0 %v1463
    %1500 = vmatprep.subr.mxu0 0.0
    %1501 = vmatpush2.msra.mxu0 0.0
    %1502 = vmatprep.subr.mxu0 0.0
    %1503 = vmatpush2.msra.mxu0 0.0
    %1504 = vmatprep.subr.mxu0 0.0
    %1505 = vmatpush2.msra.mxu0 0.0
    %1506 = vmatprep.subr.mxu0 0.0
    %1507 = vmatpush2.msra.mxu0 0.0
    %1508 = vmatprep.subr.mxu0 0.0
    %1509 = vmatpush2.msra.mxu0 0.0
    %1510 = vmatprep.subr.mxu0 0.0
    %1511 = vmatpush2.msra.mxu0 0.0
    %1512 = vmatprep.subr.mxu0 0.0
    %1513 = vmatpush2.msra.mxu0 0.0
    %1514 = vmatprep.subr.mxu0 0.0
    %1515 = vmatpush2.msra.mxu0 0.0
    %1516 = vmatprep.subr.mxu0 0.0
    %1517 = vmatpush2.msra.mxu0 0.0
    %1518 = vmatprep.subr.mxu0 0.0
    %1519 = vmatpush2.msra.mxu0 0.0
    %1520 = vmatprep.subr.mxu0 0.0
    %1521 = vmatpush2.msra.mxu0 0.0
    %1522 = vmatprep.subr.mxu0 0.0
    %1523 = vmatpush2.msra.mxu0 0.0
    %1524 = vmatprep.subr.mxu0 0.0
    %1525 = vmatpush2.msra.mxu0 0.0
    %1526 = vmatprep.subr.mxu0 0.0
    %1527 = vmatpush2.msra.mxu0 0.0
    %1528 = vmatprep.subr.mxu0 0.0
    %1529 = vmatpush2.msra.mxu0 0.0
    %1530 = vmatprep.subr.mxu0 0.0
    %1531 = vmatpush2.msra.mxu0 0.0
    %1532 = vmatprep.mubr.f32.mxu0 0.0
    %1533 = vmatmul.mubr.f32.gmra.mxu0 %v1466
    %v1534 = vpop.f32.mrf.mxu0
    %v1535 = vadd.f32 0.0, %v1534
    %v1536 = vpop.f32.mrf.mxu0
    %1537 = vdwg.mxu0
    %1540 = vrot.lane.b32.xlu0 %v786, 16
    %v1541 = vpop.permute.xlu0 %1540
    %1542 = vrot.lane.b32.xlu0 %v863, 16
    %v1543 = vpop.permute.xlu0 %1542
    %1548 = vrot.lane.b32.xlu0 %v1123, 32
    %v1549 = vpop.permute.xlu0 %1548
    %1550 = vrot.lane.b32.xlu0 %v1199, 32
    %v1551 = vpop.permute.xlu0 %1550
    %1556 = vrot.lane.b32.xlu0 %v1459, 48
    %v1557 = vpop.permute.xlu0 %1556
    %1558 = vrot.lane.b32.xlu0 %v1535, 48
    %v1559 = vpop.permute.xlu0 %1558
    %v1562 = vsel %vm199, %v452, %v1541
    %v1563 = vsel %vm199, %v525, %v1543
    %vm1564 = vcmask 261120
    %v1565 = vsel %vm1564, %v1562, %v1549
    %v1566 = vsel %vm1564, %v1563, %v1551
    %vm1567 = vcmask 392192
    %v1568 = vsel %vm1567, %v1565, %v1557
    %v1569 = vsel %vm1567, %v1566, %v1559
    %v1571 = vsel %vm110, %v1568, 0
    %v1574 = vsel %vm110, %v1569, 0
    %1576 = vmatprep.subr.mxu0 0.0
    %1577 = vmatpush1.msra.mxu0 0.0
    %1578 = vmatprep.subr.mxu0 0.0
    %1579 = vmatpush1.msra.mxu0 0.0
    %1580 = vmatprep.subr.mxu0 0.0
    %1581 = vmatpush1.msra.mxu0 0.0
    %1582 = vmatprep.subr.mxu0 0.0
    %1583 = vmatpush1.msra.mxu0 0.0
    %1584 = vmatprep.subr.mxu0 0.0
    %1585 = vmatpush1.msra.mxu0 0.0
    %1586 = vmatprep.subr.mxu0 0.0
    %1587 = vmatpush1.msra.mxu0 0.0
    %1588 = vmatprep.subr.mxu0 0.0
    %1589 = vmatpush1.msra.mxu0 0.0
    %1590 = vmatprep.subr.mxu0 0.0
    %1591 = vmatpush1.msra.mxu0 0.0
    %1592 = vmatprep.subr.mxu0 0.0
    %1593 = vmatpush1.msra.mxu0 %v63
    %1594 = vmatprep.subr.mxu0 0.0
    %1595 = vmatpush1.msra.mxu0 %v62
    %1596 = vmatprep.subr.mxu0 0.0
    %1597 = vmatpush1.msra.mxu0 %v61
    %1598 = vmatprep.subr.mxu0 0.0
    %1599 = vmatpush1.msra.mxu0 %v60
    %1600 = vmatprep.subr.mxu0 0.0
    %1601 = vmatpush1.msra.mxu0 %v59
    %1602 = vmatprep.subr.mxu0 0.0
    %1603 = vmatpush1.msra.mxu0 %v58
    %1604 = vmatprep.subr.mxu0 0.0
    %1605 = vmatpush1.msra.mxu0 %v57
    %1606 = vmatprep.subr.mxu0 0.0
    %1607 = vmatpush1.msra.mxu0 %v56
    %1608 = vmatprep.subr.mxu0 0.0
    %1609 = vmatpush2.msra.mxu0 0.0
    %1610 = vmatprep.subr.mxu0 0.0
    %1611 = vmatpush2.msra.mxu0 0.0
    %1612 = vmatprep.subr.mxu0 0.0
    %1613 = vmatpush2.msra.mxu0 0.0
    %1614 = vmatprep.subr.mxu0 0.0
    %1615 = vmatpush2.msra.mxu0 0.0
    %1616 = vmatprep.subr.mxu0 0.0
    %1617 = vmatpush2.msra.mxu0 0.0
    %1618 = vmatprep.subr.mxu0 0.0
    %1619 = vmatpush2.msra.mxu0 0.0
    %1620 = vmatprep.subr.mxu0 0.0
    %1621 = vmatpush2.msra.mxu0 0.0
    %1622 = vmatprep.subr.mxu0 0.0
    %1623 = vmatpush2.msra.mxu0 0.0
    %1624 = vmatprep.subr.mxu0 0.0
    %1625 = vmatpush2.msra.mxu0 0.0
    %1626 = vmatprep.subr.mxu0 0.0
    %1627 = vmatpush2.msra.mxu0 0.0
    %1628 = vmatprep.subr.mxu0 0.0
    %1629 = vmatpush2.msra.mxu0 0.0
    %1630 = vmatprep.subr.mxu0 0.0
    %1631 = vmatpush2.msra.mxu0 0.0
    %1632 = vmatprep.subr.mxu0 0.0
    %1633 = vmatpush2.msra.mxu0 0.0
    %1634 = vmatprep.subr.mxu0 0.0
    %1635 = vmatpush2.msra.mxu0 0.0
    %1636 = vmatprep.subr.mxu0 0.0
    %1637 = vmatpush2.msra.mxu0 0.0
    %1638 = vmatprep.subr.mxu0 0.0
    %1639 = vmatpush2.msra.mxu0 0.0
    %1640 = vmatprep.mubr.f32.mxu0 0.0
    %1641 = vmatmul.mubr.f32.gmra.mxu0 %v1571
    %v1642 = vpop.f32.mrf.mxu0
    %v1643 = vadd.f32 %v90, %v1642
    %v1644 = vpop.f32.mrf.mxu0
    %1645 = vmatprep.mubr.f32.mxu0 0.0
    %1646 = vmatmul.mubr.f32.gmra.mxu0 %v1574
    %v1647 = vpop.f32.mrf.mxu0
    %v1648 = vadd.f32 %v90, %v1647
    %v1649 = vpop.f32.mrf.mxu0
    %1650 = vdwg.mxu0
    %v1651 = vadd.f32 %v97, %v1643
    %v1652 = vadd.f32 %v98, %v1648
    %v1653 = vsel %vm110, %v1651, 0.0
    %1654 = vadd.xlane.f32.xlu0 %v1653
    %v1655 = vpop.xlane.xlu0 %1654
    %v1656 = vsel %vm110, %v1652, 0.0
    %1657 = vadd.xlane.f32.xlu0 %v1656
    %v1658 = vpop.xlane.xlu0 %1657
    %v1659 = vrcp.pop 64.0
    %v1660 = vmul.f32 %v1655, %v1659
    %v1661 = vmul.f32 %v1658, %v1659
    %v1662 = vsub.f32 %v1651, %v1660
    %v1663 = vsub.f32 %v1652, %v1661
    %v1664 = vmul.f32 %v1662, %v1662
    %v1665 = vmul.f32 %v1663, %v1663
    %v1666 = vsel %vm110, %v1664, 0.0
    %1667 = vadd.xlane.f32.xlu0 %v1666
    %v1668 = vpop.xlane.xlu0 %1667
    %v1669 = vsel %vm110, %v1665, 0.0
    %1670 = vadd.xlane.f32.xlu0 %v1669
    %v1671 = vpop.xlane.xlu0 %1670
    %v1672 = vmul.f32 %v1668, %v1659
    %v1673 = vmul.f32 %v1671, %v1659
    %v1674 = vadd.f32 %v1672, 1e-05
    %v1675 = vadd.f32 %v1673, 1e-05
    %v1676 = vrsqrt.pop %v1674
    %v1677 = vrsqrt.pop %v1675
    %v1678 = vmul.f32 %v1662, %v1676
    %v1679 = vmul.f32 %v1663, %v1677
    %v1680 = vmul.f32 %v1678, %v91
    %v1681 = vmul.f32 %v1679, %v91
    %v1682 = vadd.f32 %v1680, %v92
    %v1683 = vadd.f32 %v1681, %v92
    %v1685 = vsel %vm110, %v1682, 0
    %v1688 = vsel %vm110, %v1683, 0
    %1690 = vmatprep.subr.mxu0 0.0
    %1691 = vmatpush1.msra.mxu0 0.0
    %1692 = vmatprep.subr.mxu0 0.0
    %1693 = vmatpush1.msra.mxu0 0.0
    %1694 = vmatprep.subr.mxu0 0.0
    %1695 = vmatpush1.msra.mxu0 0.0
    %1696 = vmatprep.subr.mxu0 0.0
    %1697 = vmatpush1.msra.mxu0 0.0
    %1698 = vmatprep.subr.mxu0 0.0
    %1699 = vmatpush1.msra.mxu0 0.0
    %1700 = vmatprep.subr.mxu0 0.0
    %1701 = vmatpush1.msra.mxu0 0.0
    %1702 = vmatprep.subr.mxu0 0.0
    %1703 = vmatpush1.msra.mxu0 0.0
    %1704 = vmatprep.subr.mxu0 0.0
    %1705 = vmatpush1.msra.mxu0 0.0
    %1706 = vmatprep.subr.mxu0 0.0
    %1707 = vmatpush1.msra.mxu0 %v71
    %1708 = vmatprep.subr.mxu0 0.0
    %1709 = vmatpush1.msra.mxu0 %v70
    %1710 = vmatprep.subr.mxu0 0.0
    %1711 = vmatpush1.msra.mxu0 %v69
    %1712 = vmatprep.subr.mxu0 0.0
    %1713 = vmatpush1.msra.mxu0 %v68
    %1714 = vmatprep.subr.mxu0 0.0
    %1715 = vmatpush1.msra.mxu0 %v67
    %1716 = vmatprep.subr.mxu0 0.0
    %1717 = vmatpush1.msra.mxu0 %v66
    %1718 = vmatprep.subr.mxu0 0.0
    %1719 = vmatpush1.msra.mxu0 %v65
    %1720 = vmatprep.subr.mxu0 0.0
    %1721 = vmatpush1.msra.mxu0 %v64
    %1722 = vmatprep.subr.mxu0 0.0
    %1723 = vmatpush2.msra.mxu0 0.0
    %1724 = vmatprep.subr.mxu0 0.0
    %1725 = vmatpush2.msra.mxu0 0.0
    %1726 = vmatprep.subr.mxu0 0.0
    %1727 = vmatpush2.msra.mxu0 0.0
    %1728 = vmatprep.subr.mxu0 0.0
    %1729 = vmatpush2.msra.mxu0 0.0
    %1730 = vmatprep.subr.mxu0 0.0
    %1731 = vmatpush2.msra.mxu0 0.0
    %1732 = vmatprep.subr.mxu0 0.0
    %1733 = vmatpush2.msra.mxu0 0.0
    %1734 = vmatprep.subr.mxu0 0.0
    %1735 = vmatpush2.msra.mxu0 0.0
    %1736 = vmatprep.subr.mxu0 0.0
    %1737 = vmatpush2.msra.mxu0 0.0
    %1738 = vmatprep.subr.mxu0 0.0
    %1739 = vmatpush2.msra.mxu0 0.0
    %1740 = vmatprep.subr.mxu0 0.0
    %1741 = vmatpush2.msra.mxu0 0.0
    %1742 = vmatprep.subr.mxu0 0.0
    %1743 = vmatpush2.msra.mxu0 0.0
    %1744 = vmatprep.subr.mxu0 0.0
    %1745 = vmatpush2.msra.mxu0 0.0
    %1746 = vmatprep.subr.mxu0 0.0
    %1747 = vmatpush2.msra.mxu0 0.0
    %1748 = vmatprep.subr.mxu0 0.0
    %1749 = vmatpush2.msra.mxu0 0.0
    %1750 = vmatprep.subr.mxu0 0.0
    %1751 = vmatpush2.msra.mxu0 0.0
    %1752 = vmatprep.subr.mxu0 0.0
    %1753 = vmatpush2.msra.mxu0 0.0
    %1754 = vmatprep.mubr.f32.mxu0 0.0
    %1755 = vmatmul.mubr.f32.gmra.mxu0 %v1685
    %v1756 = vpop.f32.mrf.mxu0
    %v1757 = vadd.f32 %v93, %v1756
    %v1758 = vpop.f32.mrf.mxu0
    %1759 = vmatprep.mubr.f32.mxu0 0.0
    %1760 = vmatmul.mubr.f32.gmra.mxu0 %v1688
    %v1761 = vpop.f32.mrf.mxu0
    %v1762 = vadd.f32 %v93, %v1761
    %v1763 = vpop.f32.mrf.mxu0
    %1764 = vdwg.mxu0
    %v1765 = vmax.f32 %v1757, 0.0
    %v1766 = vmax.f32 %v1762, 0.0
    %1767 = vmatprep.subr.mxu0 0.0
    %1768 = vmatpush1.msra.mxu0 %v87
    %1769 = vmatprep.subr.mxu0 0.0
    %1770 = vmatpush1.msra.mxu0 %v86
    %1771 = vmatprep.subr.mxu0 0.0
    %1772 = vmatpush1.msra.mxu0 %v85
    %1773 = vmatprep.subr.mxu0 0.0
    %1774 = vmatpush1.msra.mxu0 %v84
    %1775 = vmatprep.subr.mxu0 0.0
    %1776 = vmatpush1.msra.mxu0 %v83
    %1777 = vmatprep.subr.mxu0 0.0
    %1778 = vmatpush1.msra.mxu0 %v82
    %1779 = vmatprep.subr.mxu0 0.0
    %1780 = vmatpush1.msra.mxu0 %v81
    %1781 = vmatprep.subr.mxu0 0.0
    %1782 = vmatpush1.msra.mxu0 %v80
    %1783 = vmatprep.subr.mxu0 0.0
    %1784 = vmatpush1.msra.mxu0 %v79
    %1785 = vmatprep.subr.mxu0 0.0
    %1786 = vmatpush1.msra.mxu0 %v78
    %1787 = vmatprep.subr.mxu0 0.0
    %1788 = vmatpush1.msra.mxu0 %v77
    %1789 = vmatprep.subr.mxu0 0.0
    %1790 = vmatpush1.msra.mxu0 %v76
    %1791 = vmatprep.subr.mxu0 0.0
    %1792 = vmatpush1.msra.mxu0 %v75
    %1793 = vmatprep.subr.mxu0 0.0
    %1794 = vmatpush1.msra.mxu0 %v74
    %1795 = vmatprep.subr.mxu0 0.0
    %1796 = vmatpush1.msra.mxu0 %v73
    %1797 = vmatprep.subr.mxu0 0.0
    %1798 = vmatpush1.msra.mxu0 %v72
    %1799 = vmatprep.subr.mxu0 0.0
    %1800 = vmatpush2.msra.mxu0 0.0
    %1801 = vmatprep.subr.mxu0 0.0
    %1802 = vmatpush2.msra.mxu0 0.0
    %1803 = vmatprep.subr.mxu0 0.0
    %1804 = vmatpush2.msra.mxu0 0.0
    %1805 = vmatprep.subr.mxu0 0.0
    %1806 = vmatpush2.msra.mxu0 0.0
    %1807 = vmatprep.subr.mxu0 0.0
    %1808 = vmatpush2.msra.mxu0 0.0
    %1809 = vmatprep.subr.mxu0 0.0
    %1810 = vmatpush2.msra.mxu0 0.0
    %1811 = vmatprep.subr.mxu0 0.0
    %1812 = vmatpush2.msra.mxu0 0.0
    %1813 = vmatprep.subr.mxu0 0.0
    %1814 = vmatpush2.msra.mxu0 0.0
    %1815 = vmatprep.subr.mxu0 0.0
    %1816 = vmatpush2.msra.mxu0 0.0
    %1817 = vmatprep.subr.mxu0 0.0
    %1818 = vmatpush2.msra.mxu0 0.0
    %1819 = vmatprep.subr.mxu0 0.0
    %1820 = vmatpush2.msra.mxu0 0.0
    %1821 = vmatprep.subr.mxu0 0.0
    %1822 = vmatpush2.msra.mxu0 0.0
    %1823 = vmatprep.subr.mxu0 0.0
    %1824 = vmatpush2.msra.mxu0 0.0
    %1825 = vmatprep.subr.mxu0 0.0
    %1826 = vmatpush2.msra.mxu0 0.0
    %1827 = vmatprep.subr.mxu0 0.0
    %1828 = vmatpush2.msra.mxu0 0.0
    %1829 = vmatprep.subr.mxu0 0.0
    %1830 = vmatpush2.msra.mxu0 0.0
    %1831 = vmatprep.mubr.f32.mxu0 0.0
    %1832 = vmatmul.mubr.f32.gmra.mxu0 %v1765
    %v1833 = vpop.f32.mrf.mxu0
    %v1834 = vadd.f32 %v94, %v1833
    %v1835 = vpop.f32.mrf.mxu0
    %1836 = vmatprep.mubr.f32.mxu0 0.0
    %1837 = vmatmul.mubr.f32.gmra.mxu0 %v1766
    %v1838 = vpop.f32.mrf.mxu0
    %v1839 = vadd.f32 %v94, %v1838
    %v1840 = vpop.f32.mrf.mxu0
    %1841 = vdwg.mxu0
    %v1842 = vadd.f32 %v1682, %v1834
    %v1843 = vadd.f32 %v1683, %v1839
    %v1844 = vsel %vm110, %v1842, 0.0
    %1845 = vadd.xlane.f32.xlu0 %v1844
    %v1846 = vpop.xlane.xlu0 %1845
    %v1847 = vsel %vm110, %v1843, 0.0
    %1848 = vadd.xlane.f32.xlu0 %v1847
    %v1849 = vpop.xlane.xlu0 %1848
    %v1850 = vmul.f32 %v1846, %v1659
    %v1851 = vmul.f32 %v1849, %v1659
    %v1852 = vsub.f32 %v1842, %v1850
    %v1853 = vsub.f32 %v1843, %v1851
    %v1854 = vmul.f32 %v1852, %v1852
    %v1855 = vmul.f32 %v1853, %v1853
    %v1856 = vsel %vm110, %v1854, 0.0
    %1857 = vadd.xlane.f32.xlu0 %v1856
    %v1858 = vpop.xlane.xlu0 %1857
    %v1859 = vsel %vm110, %v1855, 0.0
    %1860 = vadd.xlane.f32.xlu0 %v1859
    %v1861 = vpop.xlane.xlu0 %1860
    %v1862 = vmul.f32 %v1858, %v1659
    %v1863 = vmul.f32 %v1861, %v1659
    %v1864 = vadd.f32 %v1862, 1e-05
    %v1865 = vadd.f32 %v1863, 1e-05
    %v1866 = vrsqrt.pop %v1864
    %v1867 = vrsqrt.pop %v1865
    %v1868 = vmul.f32 %v1852, %v1866
    %v1869 = vmul.f32 %v1853, %v1867
    %v1870 = vmul.f32 %v1868, %v95
    %v1871 = vmul.f32 %v1869, %v95
    %v1872 = vadd.f32 %v1870, %v96
    %v1873 = vadd.f32 %v1871, %v96
    %1874 = vst.msk [vmem:[#allocation7] sm:$0xff] %vm110, %v1872
    %1875 = vst.msk [vmem:[#allocation7 + $0x8] sm:$0xff] %vm110, %v1873
    // Predicated region
    $region18: #{tpu_custom_call.1} parent=1 // pred_check
      _
    $region19: #{tpu_custom_call.1} parent=1 // pred_check_branch
      %1877 = sbr.rel (0) target = $region21
    $region20: #{tpu_custom_call.1} parent=1 // pred_region
      %s1879 = ssub.s32 256, 256
      %1880 = vsyncadd [#allocation4], %s1879
      %s1881 = sshll.u32 [#allocation7], 4
      %s1882 = int_to_ptr.vmem [resolvable:$true] %s1881
      %1887 = dma.vmem_to_hbm [thread:$0]  %s1882, 256, %s2, [#allocation4], 128, 128, 8
    $region21: #{tpu_custom_call.1} parent=1 // pred_fallthru
      _
    // Predicated region
    $region22: #{tpu_custom_call.1} parent=1 // pred_check
      _
    $region23: #{tpu_custom_call.1} parent=1 // pred_check_branch
      %1889 = sbr.rel (0) target = $region25
    $region24: #{tpu_custom_call.1} parent=1 // pred_region
      %1890 = dma.done [#allocation4], 256
    $region25: #{tpu_custom_call.1} parent=1 // pred_fallthru
      _
    %1891 = vsyncpa [#allocation3], 1
    %1892 = vsyncpa [#allocation6], 1
    %1893 = vsyncpa [#allocation4], 1

</llo_original>
